<compile_context>
chip_gen: v7x
topology: tpu7x:2x2x1
jax: 0.10.0
libtpu: 0.0.40
codegen_flags: <defaults>
</compile_context>

<pallas_src>
import functools
import math

import jax
import jax.numpy as jnp
from jax.experimental import pallas as pl


LANE = 128  # classifier logits padded to one full lane group


# ------------------------------ fused kernel ------------------------------- #

def _bert_fwd_kernel(
    emb_ref, bias_ref, eg_ref, eb_ref,
    wqkv_ref, bqkv_ref, wo_ref, bo_ref,
    ln1g_ref, ln1b_ref, w1_ref, b1_ref, w2_ref, b2_ref, ln2g_ref, ln2b_ref,
    pw_ref, pb_ref, cw_ref, cb_ref,
    logits_ref, probs_ref, hidden_ref,
    *, num_layers, num_heads, head_dim, hidden_dim, batch, seq_len, eps, scale):
  """Single invocation: whole (B*L)-row batch slab through the encoder,
  tanh pooler and (lane-padded) classifier head.

  emb_ref    : (B*L, H)         f32  token+position embeddings (batch rows stacked)
  bias_ref   : (B*L, B*L)       f32  block-diagonal attention bias (0 keep / -1e9 drop)
  weights    : MXU operands bf16, biases / LN params f32 (per-layer stacked)
  logits_ref : (B, 128)         f32  columns >= out_dim are zero; wrapper slices
  probs_ref  : (B*L, nL*nH*B*L) f32  attention probs, (layer,head) lane-blocks, ONE store
  hidden_ref : (B*L, H)         f32  last hidden state
  """
  H, dH = hidden_dim, head_dim

  def layernorm(x, g, b):
    mean = jnp.mean(x, axis=-1, keepdims=True)
    xc = x - mean
    var = jnp.mean(xc * xc, axis=-1, keepdims=True)
    return xc * jax.lax.rsqrt(var + eps) * g + b

  def mm(x, w):
    # bf16 MXU matmul with f32 accumulation.
    return jnp.dot(x.astype(jnp.bfloat16), w.astype(jnp.bfloat16),
                   preferred_element_type=jnp.float32)

  # embedding LayerNorm (no residual)
  h = layernorm(emb_ref[...], eg_ref[...], eb_ref[...])            # (S, H) f32
  bias = bias_ref[...]                                             # (S, S) f32, loaded once

  prob_blocks = []
  for l in range(num_layers):                                      # unrolled
    # fused QKV projection: one (S,H) @ (H,3H) GEMM
    qkv = mm(h, wqkv_ref[l]) + bqkv_ref[l]                         # (S, 3H) f32

    ctx_blocks = []
    for hd in range(num_heads):                                    # unrolled
      q = qkv[:, hd * dH:(hd + 1) * dH]                            # (S, dH)
      k = qkv[:, H + hd * dH:H + (hd + 1) * dH]
      v = qkv[:, 2 * H + hd * dH:2 * H + (hd + 1) * dH]
      # scores over the full stacked batch; block-diagonal bias keeps batches apart
      s = jax.lax.dot_general(
          q.astype(jnp.bfloat16), k.astype(jnp.bfloat16),
          (((1,), (1,)), ((), ())),
          preferred_element_type=jnp.float32) * scale              # (S, S) f32
      s = s + bias                                                 # mask in f32
      m = jnp.max(s, axis=-1, keepdims=True)
      e = jnp.exp(s - m)
      p = e / jnp.sum(e, axis=-1, keepdims=True)                   # exact softmax
      prob_blocks.append(p)
      ctx_blocks.append(mm(p, v))                                  # (S, dH)

    # single output-projection GEMM over all heads: (S,H) @ (H,H)
    ctx = jnp.concatenate(ctx_blocks, axis=-1)                     # (S, H)
    attn = mm(ctx, wo_ref[l]) + bo_ref[l]
    h = layernorm(attn + h, ln1g_ref[l], ln1b_ref[l])

    # feed-forward
    # TODO(synk): PyTorch nn.GELU default is the exact erf form; tanh approx used here.
    ff = mm(h, w1_ref[l]) + b1_ref[l]
    c = math.sqrt(2.0 / math.pi)
    ff = 0.5 * ff * (1.0 + jnp.tanh(c * (ff + 0.044715 * ff * ff * ff)))
    ff = mm(ff, w2_ref[l]) + b2_ref[l]
    h = layernorm(ff + h, ln2g_ref[l], ln2b_ref[l])

  hidden_ref[...] = h                                              # last hidden

  # all attention probs as ONE lane-blocked store
  probs_ref[...] = jnp.concatenate(prob_blocks, axis=-1)           # (S, nL*nH*S)

  # pooler: tanh(cls @ Wp + bp); classifier head (Dropout == identity at eval)
  cls = jnp.concatenate(
      [h[b * seq_len:b * seq_len + 1, :] for b in range(batch)], axis=0)  # (B, H)
  pooled = jnp.tanh(mm(cls, pw_ref[...]) + pb_ref[...])            # (B, H)
  logits_ref[...] = mm(pooled, cw_ref[...]) + cb_ref[...]          # (B, 128)


# ------------------------------- model setup ------------------------------- #

class Config:
  vocab_size = 50
  max_pos = 64
  hidden_dim = 32       # args.hidden_dim
  num_heads = 2
  head_dim = 16
  intermediate_dim = 64
  num_layers = 2
  out_dim = 4           # args.out_dim
  p_dropout = 0.1       # identity at inference
  fc_dim = 16           # present in args, unused by forward


def init_params(cfg, key):
  f32, bf16 = jnp.float32, jnp.bfloat16
  H, I = cfg.hidden_dim, cfg.intermediate_dim
  nL, O = cfg.num_layers, cfg.out_dim

  def nrm(k, shape, dtype=f32, scale=0.02):
    return (scale * jax.random.normal(k, shape, dtype=jnp.float32)).astype(dtype)

  ks = iter(jax.random.split(key, 16))
  return {
      "word_emb": nrm(next(ks), (cfg.vocab_size, H)),
      "pos_emb": nrm(next(ks), (cfg.max_pos, H)),
      "emb_ln_g": jnp.ones((1, H), f32),
      "emb_ln_b": jnp.zeros((1, H), f32),
      # per-layer stacked weights; MXU operands stored in bf16
      "wqkv": nrm(next(ks), (nL, H, 3 * H), bf16),   # fused Wq|Wk|Wv
      "bqkv": jnp.zeros((nL, 1, 3 * H), f32),
      "wo": nrm(next(ks), (nL, H, H), bf16),
      "bo": jnp.zeros((nL, 1, H), f32),
      "ln1_g": jnp.ones((nL, 1, H), f32),
      "ln1_b": jnp.zeros((nL, 1, H), f32),
      "w1": nrm(next(ks), (nL, H, I), bf16),
      "b1": jnp.zeros((nL, 1, I), f32),
      "w2": nrm(next(ks), (nL, I, H), bf16),
      "b2": jnp.zeros((nL, 1, H), f32),
      "ln2_g": jnp.ones((nL, 1, H), f32),
      "ln2_b": jnp.zeros((nL, 1, H), f32),
      "pooler_w": nrm(next(ks), (H, H), bf16),
      "pooler_b": jnp.zeros((1, H), f32),
      "cls_w": nrm(next(ks), (H, O), bf16),
      "cls_b": jnp.zeros((1, O), f32),
  }


def bert_classifier_forward(params, cfg, input_ids, attention_mask):
  B, L = input_ids.shape
  H, nH, dH = cfg.hidden_dim, cfg.num_heads, cfg.head_dim
  nL, O = cfg.num_layers, cfg.out_dim
  S = B * L

  mask_f = attention_mask.astype(jnp.float32)                      # (B, L)

  # embeddings (gather + position add is glue)
  emb = jnp.take(params["word_emb"], input_ids, axis=0)            # (B, L, H)
  emb = emb + params["pos_emb"][:L][None, :, :]
  emb = emb.reshape(S, H).astype(jnp.float32)

  # block-diagonal attention bias over the stacked B*L rows:
  # query (b, i) may attend key (b', k) iff b == b' and mask[b', k] == 1.
  eye = jnp.eye(B, dtype=jnp.float32)
  allow = eye[:, None, :, None] * mask_f[None, None, :, :]         # (B,1,B,L)
  allow = jnp.broadcast_to(allow, (B, L, B, L)).reshape(S, S)
  neg_bias = (1.0 - allow) * (-1e9)                                # (S, S) f32

  # classifier weights padded to a full 128-lane output (wrapper slices back)
  cls_w = jnp.pad(params["cls_w"], ((0, 0), (0, LANE - O)))
  cls_b = jnp.pad(params["cls_b"], ((0, 0), (0, LANE - O)))

  kernel = functools.partial(
      _bert_fwd_kernel,
      num_layers=nL, num_heads=nH, head_dim=dH, hidden_dim=H,
      batch=B, seq_len=L, eps=1e-12, scale=1.0 / math.sqrt(dH))

  out_shape = (
      jax.ShapeDtypeStruct((B, LANE), jnp.float32),                # padded logits
      jax.ShapeDtypeStruct((S, nL * nH * S), jnp.float32),         # attn probs (lane blocks)
      jax.ShapeDtypeStruct((S, H), jnp.float32),                   # last hidden
  )

  # Single no-grid invocation: the whole toy problem fits in VMEM, so there is
  # no serial per-batch grid loop and no double-buffering overhead (v5e/v6e
  # have a single TensorCore — grid=(B,) was a serial 2-step loop).
  # TODO(synk): at real BERT sizes add an 'arbitrary' layer grid axis so
  # wqkv/wo/w1/w2 stream per-layer (v7x 64 MiB VMEM), and tile / drop probs.
  logits_pad, probs_flat, hidden = pl.pallas_call(
      kernel, out_shape=out_shape,
  )(emb, neg_bias, params["emb_ln_g"], params["emb_ln_b"],
    params["wqkv"], params["bqkv"], params["wo"], params["bo"],
    params["ln1_g"], params["ln1_b"], params["w1"], params["b1"],
    params["w2"], params["b2"], params["ln2_g"], params["ln2_b"],
    params["pooler_w"], params["pooler_b"], cls_w, cls_b)

  logits = logits_pad[:, :O]

  # probs_flat[(bq*L+i), ((l*nH+h)*S + bk*L+k)] -> per-layer (B, nH, L, L) diag blocks
  probs6 = probs_flat.reshape(B, L, nL, nH, B, L)
  bidx = jnp.arange(B)
  probs = probs6[bidx, :, :, :, bidx, :]                           # (B, L, nL, nH, L)
  probs = probs.transpose(2, 0, 3, 1, 4)                           # (nL, B, nH, L, L)
  attentions = tuple(probs[l] for l in range(nL))

  last_hidden = hidden.reshape(B, L, H)

  # TODO(synk): nn.Dropout(p) is identity in eval mode; training-time masking not modeled.
  return logits, attentions, last_hidden


# ----------------------------------- main ----------------------------------- #

if __name__ == "__main__":
  cfg = Config()
  key = jax.random.PRNGKey(0)
  k_param, k_ids = jax.random.split(key)

  params = init_params(cfg, k_param)

  B, L = 2, 8
  input_ids = jax.random.randint(k_ids, (B, L), 0, cfg.vocab_size, dtype=jnp.int32)
  attention_mask = jnp.concatenate(
      [jnp.ones((B, L - 2), jnp.int32), jnp.zeros((B, 2), jnp.int32)], axis=1)

  logits, attention, last_hidden = bert_classifier_forward(
      params, cfg, input_ids, attention_mask)

  jax.block_until_ready((logits, attention, last_hidden))

  assert logits.shape == (B, cfg.out_dim)
  assert last_hidden.shape == (B, L, cfg.hidden_dim)
  assert len(attention) == cfg.num_layers
  assert attention[0].shape == (B, cfg.num_heads, L, L)
  assert bool(jnp.all(jnp.isfinite(logits)))
  # softmax rows sum to ~1 (exact division now used)
  row_sums = jnp.sum(attention[0], axis=-1)
  assert bool(jnp.all(jnp.abs(row_sums - 1.0) < 1e-3))
  # padded keys get ~zero probability
  assert bool(jnp.all(attention[0][..., L - 2:] < 1e-6))

  print("KERNEL_OK")
</pallas_src>

<mosaic_0001>
module attributes {stable_mosaic.version = 11 : i64} {
  func.func @_bert_fwd_kernel(%arg0: memref<16x32xf32, #tpu.memory_space<vmem>>, %arg1: memref<16x16xf32, #tpu.memory_space<vmem>>, %arg2: memref<1x32xf32, #tpu.memory_space<vmem>>, %arg3: memref<1x32xf32, #tpu.memory_space<vmem>>, %arg4: memref<2x32x96xbf16, #tpu.memory_space<vmem>>, %arg5: memref<2x1x96xf32, #tpu.memory_space<vmem>>, %arg6: memref<2x32x32xbf16, #tpu.memory_space<vmem>>, %arg7: memref<2x1x32xf32, #tpu.memory_space<vmem>>, %arg8: memref<2x1x32xf32, #tpu.memory_space<vmem>>, %arg9: memref<2x1x32xf32, #tpu.memory_space<vmem>>, %arg10: memref<2x32x64xbf16, #tpu.memory_space<vmem>>, %arg11: memref<2x1x64xf32, #tpu.memory_space<vmem>>, %arg12: memref<2x64x32xbf16, #tpu.memory_space<vmem>>, %arg13: memref<2x1x32xf32, #tpu.memory_space<vmem>>, %arg14: memref<2x1x32xf32, #tpu.memory_space<vmem>>, %arg15: memref<2x1x32xf32, #tpu.memory_space<vmem>>, %arg16: memref<32x32xbf16, #tpu.memory_space<vmem>>, %arg17: memref<1x32xf32, #tpu.memory_space<vmem>>, %arg18: memref<32x128xbf16, #tpu.memory_space<vmem>>, %arg19: memref<1x128xf32, #tpu.memory_space<vmem>>, %arg20: memref<2x128xf32, #tpu.memory_space<vmem>>, %arg21: memref<16x64xf32, #tpu.memory_space<vmem>>, %arg22: memref<16x32xf32, #tpu.memory_space<vmem>>) attributes {dimension_semantics = [], scalar_prefetch = 0 : i64, scratch_operands = 0 : i64, tpu.core_type = #tpu.core_type<tc>} {
    %c0 = arith.constant 0 : index
    %c0_0 = arith.constant 0 : index
    %0 = vector.load %arg0[%c0, %c0_0] : memref<16x32xf32, #tpu.memory_space<vmem>>, vector<16x32xf32>
    %c0_1 = arith.constant 0 : index
    %c0_2 = arith.constant 0 : index
    %1 = vector.load %arg2[%c0_1, %c0_2] : memref<1x32xf32, #tpu.memory_space<vmem>>, vector<1x32xf32>
    %c0_3 = arith.constant 0 : index
    %c0_4 = arith.constant 0 : index
    %2 = vector.load %arg3[%c0_3, %c0_4] : memref<1x32xf32, #tpu.memory_space<vmem>>, vector<1x32xf32>
    %cst = arith.constant dense<0.000000e+00> : vector<16xf32>
    %3 = vector.multi_reduction <add>, %0, %cst [1] : vector<16x32xf32> to vector<16xf32>
    %4 = vector.shape_cast %3 : vector<16xf32> to vector<16x1xf32>
    %cst_5 = arith.constant 3.200000e+01 : f32
    %5 = vector.broadcast %cst_5 : f32 to vector<16x1xf32>
    %6 = arith.divf %4, %5 : vector<16x1xf32>
    %7 = vector.broadcast %6 : vector<16x1xf32> to vector<16x32xf32>
    %8 = arith.subf %0, %7 : vector<16x32xf32>
    %9 = arith.mulf %8, %8 : vector<16x32xf32>
    %cst_6 = arith.constant dense<0.000000e+00> : vector<16xf32>
    %10 = vector.multi_reduction <add>, %9, %cst_6 [1] : vector<16x32xf32> to vector<16xf32>
    %11 = vector.shape_cast %10 : vector<16xf32> to vector<16x1xf32>
    %cst_7 = arith.constant 3.200000e+01 : f32
    %12 = vector.broadcast %cst_7 : f32 to vector<16x1xf32>
    %13 = arith.divf %11, %12 : vector<16x1xf32>
    %cst_8 = arith.constant 9.99999996E-13 : f32
    %14 = vector.broadcast %cst_8 : f32 to vector<16x1xf32>
    %15 = arith.addf %13, %14 : vector<16x1xf32>
    %16 = math.rsqrt %15 : vector<16x1xf32>
    %17 = vector.broadcast %16 : vector<16x1xf32> to vector<16x32xf32>
    %18 = arith.mulf %8, %17 : vector<16x32xf32>
    %19 = vector.broadcast %1 : vector<1x32xf32> to vector<16x32xf32>
    %20 = arith.mulf %18, %19 : vector<16x32xf32>
    %21 = vector.broadcast %2 : vector<1x32xf32> to vector<16x32xf32>
    %22 = arith.addf %20, %21 : vector<16x32xf32>
    %c0_9 = arith.constant 0 : index
    %c0_10 = arith.constant 0 : index
    %23 = vector.load %arg1[%c0_9, %c0_10] : memref<16x16xf32, #tpu.memory_space<vmem>>, vector<16x16xf32>
    %c0_11 = arith.constant 0 : index
    %c0_12 = arith.constant 0 : index
    %c0_13 = arith.constant 0 : index
    %24 = vector.load %arg4[%c0_11, %c0_12, %c0_13] : memref<2x32x96xbf16, #tpu.memory_space<vmem>>, vector<1x32x96xbf16>
    %25 = vector.shape_cast %24 : vector<1x32x96xbf16> to vector<32x96xbf16>
    %26 = arith.truncf %22 : vector<16x32xf32> to vector<16x32xbf16>
    %cst_14 = arith.constant dense<0.000000e+00> : vector<16x96xf32>
    %27 = tpu.matmul %26, %25, %cst_14 {dimension_numbers = #tpu.dot_dimension_numbers<[1], [0], [0], [1], [0, 0, 1, 1], [], []>} : vector<16x32xbf16>, vector<32x96xbf16>, vector<16x96xf32> -> vector<16x96xf32>
    %c0_15 = arith.constant 0 : index
    %c0_16 = arith.constant 0 : index
    %c0_17 = arith.constant 0 : index
    %28 = vector.load %arg5[%c0_15, %c0_16, %c0_17] : memref<2x1x96xf32, #tpu.memory_space<vmem>>, vector<1x1x96xf32>
    %29 = vector.shape_cast %28 : vector<1x1x96xf32> to vector<1x96xf32>
    %30 = vector.broadcast %29 : vector<1x96xf32> to vector<16x96xf32>
    %31 = arith.addf %27, %30 : vector<16x96xf32>
    %32 = vector.extract_strided_slice %31 {offsets = [0, 0], sizes = [16, 16], strides = [1, 1]} : vector<16x96xf32> to vector<16x16xf32>
    %33 = vector.extract_strided_slice %31 {offsets = [0, 32], sizes = [16, 16], strides = [1, 1]} : vector<16x96xf32> to vector<16x16xf32>
    %34 = vector.extract_strided_slice %31 {offsets = [0, 64], sizes = [16, 16], strides = [1, 1]} : vector<16x96xf32> to vector<16x16xf32>
    %35 = arith.truncf %32 : vector<16x16xf32> to vector<16x16xbf16>
    %36 = arith.truncf %33 : vector<16x16xf32> to vector<16x16xbf16>
    %cst_18 = arith.constant dense<0.000000e+00> : vector<16x16xf32>
    %37 = tpu.matmul %35, %36, %cst_18 {dimension_numbers = #tpu.dot_dimension_numbers<[1], [1], [0], [0], [0, 0, 1, 0], [], []>} : vector<16x16xbf16>, vector<16x16xbf16>, vector<16x16xf32> -> vector<16x16xf32>
    %cst_19 = arith.constant 2.500000e-01 : f32
    %38 = vector.broadcast %cst_19 : f32 to vector<16x16xf32>
    %39 = arith.mulf %37, %38 : vector<16x16xf32>
    %40 = arith.addf %39, %23 : vector<16x16xf32>
    %cst_20 = arith.constant dense<0xFF800000> : vector<16xf32>
    %41 = vector.multi_reduction <maximumf>, %40, %cst_20 [1] : vector<16x16xf32> to vector<16xf32>
    %42 = vector.shape_cast %41 : vector<16xf32> to vector<16x1xf32>
    %43 = vector.broadcast %42 : vector<16x1xf32> to vector<16x16xf32>
    %44 = arith.subf %40, %43 : vector<16x16xf32>
    %45 = math.exp %44 : vector<16x16xf32>
    %cst_21 = arith.constant dense<0.000000e+00> : vector<16xf32>
    %46 = vector.multi_reduction <add>, %45, %cst_21 [1] : vector<16x16xf32> to vector<16xf32>
    %47 = vector.shape_cast %46 : vector<16xf32> to vector<16x1xf32>
    %48 = vector.broadcast %47 : vector<16x1xf32> to vector<16x16xf32>
    %49 = arith.divf %45, %48 : vector<16x16xf32>
    %50 = arith.truncf %49 : vector<16x16xf32> to vector<16x16xbf16>
    %51 = arith.truncf %34 : vector<16x16xf32> to vector<16x16xbf16>
    %cst_22 = arith.constant dense<0.000000e+00> : vector<16x16xf32>
    %52 = tpu.matmul %50, %51, %cst_22 {dimension_numbers = #tpu.dot_dimension_numbers<[1], [0], [0], [1], [0, 0, 1, 1], [], []>} : vector<16x16xbf16>, vector<16x16xbf16>, vector<16x16xf32> -> vector<16x16xf32>
    %53 = vector.extract_strided_slice %31 {offsets = [0, 16], sizes = [16, 16], strides = [1, 1]} : vector<16x96xf32> to vector<16x16xf32>
    %54 = vector.extract_strided_slice %31 {offsets = [0, 48], sizes = [16, 16], strides = [1, 1]} : vector<16x96xf32> to vector<16x16xf32>
    %55 = vector.extract_strided_slice %31 {offsets = [0, 80], sizes = [16, 16], strides = [1, 1]} : vector<16x96xf32> to vector<16x16xf32>
    %56 = arith.truncf %53 : vector<16x16xf32> to vector<16x16xbf16>
    %57 = arith.truncf %54 : vector<16x16xf32> to vector<16x16xbf16>
    %cst_23 = arith.constant dense<0.000000e+00> : vector<16x16xf32>
    %58 = tpu.matmul %56, %57, %cst_23 {dimension_numbers = #tpu.dot_dimension_numbers<[1], [1], [0], [0], [0, 0, 1, 0], [], []>} : vector<16x16xbf16>, vector<16x16xbf16>, vector<16x16xf32> -> vector<16x16xf32>
    %cst_24 = arith.constant 2.500000e-01 : f32
    %59 = vector.broadcast %cst_24 : f32 to vector<16x16xf32>
    %60 = arith.mulf %58, %59 : vector<16x16xf32>
    %61 = arith.addf %60, %23 : vector<16x16xf32>
    %cst_25 = arith.constant dense<0xFF800000> : vector<16xf32>
    %62 = vector.multi_reduction <maximumf>, %61, %cst_25 [1] : vector<16x16xf32> to vector<16xf32>
    %63 = vector.shape_cast %62 : vector<16xf32> to vector<16x1xf32>
    %64 = vector.broadcast %63 : vector<16x1xf32> to vector<16x16xf32>
    %65 = arith.subf %61, %64 : vector<16x16xf32>
    %66 = math.exp %65 : vector<16x16xf32>
    %cst_26 = arith.constant dense<0.000000e+00> : vector<16xf32>
    %67 = vector.multi_reduction <add>, %66, %cst_26 [1] : vector<16x16xf32> to vector<16xf32>
    %68 = vector.shape_cast %67 : vector<16xf32> to vector<16x1xf32>
    %69 = vector.broadcast %68 : vector<16x1xf32> to vector<16x16xf32>
    %70 = arith.divf %66, %69 : vector<16x16xf32>
    %71 = arith.truncf %70 : vector<16x16xf32> to vector<16x16xbf16>
    %72 = arith.truncf %55 : vector<16x16xf32> to vector<16x16xbf16>
    %cst_27 = arith.constant dense<0.000000e+00> : vector<16x16xf32>
    %73 = tpu.matmul %71, %72, %cst_27 {dimension_numbers = #tpu.dot_dimension_numbers<[1], [0], [0], [1], [0, 0, 1, 1], [], []>} : vector<16x16xbf16>, vector<16x16xbf16>, vector<16x16xf32> -> vector<16x16xf32>
    %74 = tpu.concatenate %52, %73 in 1 : vector<16x16xf32>, vector<16x16xf32> -> vector<16x32xf32>
    %c0_28 = arith.constant 0 : index
    %c0_29 = arith.constant 0 : index
    %c0_30 = arith.constant 0 : index
    %75 = vector.load %arg6[%c0_28, %c0_29, %c0_30] : memref<2x32x32xbf16, #tpu.memory_space<vmem>>, vector<1x32x32xbf16>
    %76 = vector.shape_cast %75 : vector<1x32x32xbf16> to vector<32x32xbf16>
    %77 = arith.truncf %74 : vector<16x32xf32> to vector<16x32xbf16>
    %cst_31 = arith.constant dense<0.000000e+00> : vector<16x32xf32>
    %78 = tpu.matmul %77, %76, %cst_31 {dimension_numbers = #tpu.dot_dimension_numbers<[1], [0], [0], [1], [0, 0, 1, 1], [], []>} : vector<16x32xbf16>, vector<32x32xbf16>, vector<16x32xf32> -> vector<16x32xf32>
    %c0_32 = arith.constant 0 : index
    %c0_33 = arith.constant 0 : index
    %c0_34 = arith.constant 0 : index
    %79 = vector.load %arg7[%c0_32, %c0_33, %c0_34] : memref<2x1x32xf32, #tpu.memory_space<vmem>>, vector<1x1x32xf32>
    %80 = vector.shape_cast %79 : vector<1x1x32xf32> to vector<1x32xf32>
    %81 = vector.broadcast %80 : vector<1x32xf32> to vector<16x32xf32>
    %82 = arith.addf %78, %81 : vector<16x32xf32>
    %83 = arith.addf %82, %22 : vector<16x32xf32>
    %c0_35 = arith.constant 0 : index
    %c0_36 = arith.constant 0 : index
    %c0_37 = arith.constant 0 : index
    %84 = vector.load %arg8[%c0_35, %c0_36, %c0_37] : memref<2x1x32xf32, #tpu.memory_space<vmem>>, vector<1x1x32xf32>
    %85 = vector.shape_cast %84 : vector<1x1x32xf32> to vector<1x32xf32>
    %c0_38 = arith.constant 0 : index
    %c0_39 = arith.constant 0 : index
    %c0_40 = arith.constant 0 : index
    %86 = vector.load %arg9[%c0_38, %c0_39, %c0_40] : memref<2x1x32xf32, #tpu.memory_space<vmem>>, vector<1x1x32xf32>
    %87 = vector.shape_cast %86 : vector<1x1x32xf32> to vector<1x32xf32>
    %cst_41 = arith.constant dense<0.000000e+00> : vector<16xf32>
    %88 = vector.multi_reduction <add>, %83, %cst_41 [1] : vector<16x32xf32> to vector<16xf32>
    %89 = vector.shape_cast %88 : vector<16xf32> to vector<16x1xf32>
    %cst_42 = arith.constant 3.200000e+01 : f32
    %90 = vector.broadcast %cst_42 : f32 to vector<16x1xf32>
    %91 = arith.divf %89, %90 : vector<16x1xf32>
    %92 = vector.broadcast %91 : vector<16x1xf32> to vector<16x32xf32>
    %93 = arith.subf %83, %92 : vector<16x32xf32>
    %94 = arith.mulf %93, %93 : vector<16x32xf32>
    %cst_43 = arith.constant dense<0.000000e+00> : vector<16xf32>
    %95 = vector.multi_reduction <add>, %94, %cst_43 [1] : vector<16x32xf32> to vector<16xf32>
    %96 = vector.shape_cast %95 : vector<16xf32> to vector<16x1xf32>
    %cst_44 = arith.constant 3.200000e+01 : f32
    %97 = vector.broadcast %cst_44 : f32 to vector<16x1xf32>
    %98 = arith.divf %96, %97 : vector<16x1xf32>
    %cst_45 = arith.constant 9.99999996E-13 : f32
    %99 = vector.broadcast %cst_45 : f32 to vector<16x1xf32>
    %100 = arith.addf %98, %99 : vector<16x1xf32>
    %101 = math.rsqrt %100 : vector<16x1xf32>
    %102 = vector.broadcast %101 : vector<16x1xf32> to vector<16x32xf32>
    %103 = arith.mulf %93, %102 : vector<16x32xf32>
    %104 = vector.broadcast %85 : vector<1x32xf32> to vector<16x32xf32>
    %105 = arith.mulf %103, %104 : vector<16x32xf32>
    %106 = vector.broadcast %87 : vector<1x32xf32> to vector<16x32xf32>
    %107 = arith.addf %105, %106 : vector<16x32xf32>
    %c0_46 = arith.constant 0 : index
    %c0_47 = arith.constant 0 : index
    %c0_48 = arith.constant 0 : index
    %108 = vector.load %arg10[%c0_46, %c0_47, %c0_48] : memref<2x32x64xbf16, #tpu.memory_space<vmem>>, vector<1x32x64xbf16>
    %109 = vector.shape_cast %108 : vector<1x32x64xbf16> to vector<32x64xbf16>
    %110 = arith.truncf %107 : vector<16x32xf32> to vector<16x32xbf16>
    %cst_49 = arith.constant dense<0.000000e+00> : vector<16x64xf32>
    %111 = tpu.matmul %110, %109, %cst_49 {dimension_numbers = #tpu.dot_dimension_numbers<[1], [0], [0], [1], [0, 0, 1, 1], [], []>} : vector<16x32xbf16>, vector<32x64xbf16>, vector<16x64xf32> -> vector<16x64xf32>
    %c0_50 = arith.constant 0 : index
    %c0_51 = arith.constant 0 : index
    %c0_52 = arith.constant 0 : index
    %112 = vector.load %arg11[%c0_50, %c0_51, %c0_52] : memref<2x1x64xf32, #tpu.memory_space<vmem>>, vector<1x1x64xf32>
    %113 = vector.shape_cast %112 : vector<1x1x64xf32> to vector<1x64xf32>
    %114 = vector.broadcast %113 : vector<1x64xf32> to vector<16x64xf32>
    %115 = arith.addf %111, %114 : vector<16x64xf32>
    %cst_53 = arith.constant 5.000000e-01 : f32
    %116 = vector.broadcast %cst_53 : f32 to vector<16x64xf32>
    %117 = arith.mulf %116, %115 : vector<16x64xf32>
    %cst_54 = arith.constant 4.471500e-02 : f32
    %118 = vector.broadcast %cst_54 : f32 to vector<16x64xf32>
    %119 = arith.mulf %118, %115 : vector<16x64xf32>
    %120 = arith.mulf %119, %115 : vector<16x64xf32>
    %121 = arith.mulf %120, %115 : vector<16x64xf32>
    %122 = arith.addf %115, %121 : vector<16x64xf32>
    %cst_55 = arith.constant 0.797884583 : f32
    %123 = vector.broadcast %cst_55 : f32 to vector<16x64xf32>
    %124 = arith.mulf %123, %122 : vector<16x64xf32>
    %125 = math.tanh %124 : vector<16x64xf32>
    %cst_56 = arith.constant 1.000000e+00 : f32
    %126 = vector.broadcast %cst_56 : f32 to vector<16x64xf32>
    %127 = arith.addf %126, %125 : vector<16x64xf32>
    %128 = arith.mulf %117, %127 : vector<16x64xf32>
    %c0_57 = arith.constant 0 : index
    %c0_58 = arith.constant 0 : index
    %c0_59 = arith.constant 0 : index
    %129 = vector.load %arg12[%c0_57, %c0_58, %c0_59] : memref<2x64x32xbf16, #tpu.memory_space<vmem>>, vector<1x64x32xbf16>
    %130 = vector.shape_cast %129 : vector<1x64x32xbf16> to vector<64x32xbf16>
    %131 = arith.truncf %128 : vector<16x64xf32> to vector<16x64xbf16>
    %cst_60 = arith.constant dense<0.000000e+00> : vector<16x32xf32>
    %132 = tpu.matmul %131, %130, %cst_60 {dimension_numbers = #tpu.dot_dimension_numbers<[1], [0], [0], [1], [0, 0, 1, 1], [], []>} : vector<16x64xbf16>, vector<64x32xbf16>, vector<16x32xf32> -> vector<16x32xf32>
    %c0_61 = arith.constant 0 : index
    %c0_62 = arith.constant 0 : index
    %c0_63 = arith.constant 0 : index
    %133 = vector.load %arg13[%c0_61, %c0_62, %c0_63] : memref<2x1x32xf32, #tpu.memory_space<vmem>>, vector<1x1x32xf32>
    %134 = vector.shape_cast %133 : vector<1x1x32xf32> to vector<1x32xf32>
    %135 = vector.broadcast %134 : vector<1x32xf32> to vector<16x32xf32>
    %136 = arith.addf %132, %135 : vector<16x32xf32>
    %137 = arith.addf %136, %107 : vector<16x32xf32>
    %c0_64 = arith.constant 0 : index
    %c0_65 = arith.constant 0 : index
    %c0_66 = arith.constant 0 : index
    %138 = vector.load %arg14[%c0_64, %c0_65, %c0_66] : memref<2x1x32xf32, #tpu.memory_space<vmem>>, vector<1x1x32xf32>
    %139 = vector.shape_cast %138 : vector<1x1x32xf32> to vector<1x32xf32>
    %c0_67 = arith.constant 0 : index
    %c0_68 = arith.constant 0 : index
    %c0_69 = arith.constant 0 : index
    %140 = vector.load %arg15[%c0_67, %c0_68, %c0_69] : memref<2x1x32xf32, #tpu.memory_space<vmem>>, vector<1x1x32xf32>
    %141 = vector.shape_cast %140 : vector<1x1x32xf32> to vector<1x32xf32>
    %cst_70 = arith.constant dense<0.000000e+00> : vector<16xf32>
    %142 = vector.multi_reduction <add>, %137, %cst_70 [1] : vector<16x32xf32> to vector<16xf32>
    %143 = vector.shape_cast %142 : vector<16xf32> to vector<16x1xf32>
    %cst_71 = arith.constant 3.200000e+01 : f32
    %144 = vector.broadcast %cst_71 : f32 to vector<16x1xf32>
    %145 = arith.divf %143, %144 : vector<16x1xf32>
    %146 = vector.broadcast %145 : vector<16x1xf32> to vector<16x32xf32>
    %147 = arith.subf %137, %146 : vector<16x32xf32>
    %148 = arith.mulf %147, %147 : vector<16x32xf32>
    %cst_72 = arith.constant dense<0.000000e+00> : vector<16xf32>
    %149 = vector.multi_reduction <add>, %148, %cst_72 [1] : vector<16x32xf32> to vector<16xf32>
    %150 = vector.shape_cast %149 : vector<16xf32> to vector<16x1xf32>
    %cst_73 = arith.constant 3.200000e+01 : f32
    %151 = vector.broadcast %cst_73 : f32 to vector<16x1xf32>
    %152 = arith.divf %150, %151 : vector<16x1xf32>
    %cst_74 = arith.constant 9.99999996E-13 : f32
    %153 = vector.broadcast %cst_74 : f32 to vector<16x1xf32>
    %154 = arith.addf %152, %153 : vector<16x1xf32>
    %155 = math.rsqrt %154 : vector<16x1xf32>
    %156 = vector.broadcast %155 : vector<16x1xf32> to vector<16x32xf32>
    %157 = arith.mulf %147, %156 : vector<16x32xf32>
    %158 = vector.broadcast %139 : vector<1x32xf32> to vector<16x32xf32>
    %159 = arith.mulf %157, %158 : vector<16x32xf32>
    %160 = vector.broadcast %141 : vector<1x32xf32> to vector<16x32xf32>
    %161 = arith.addf %159, %160 : vector<16x32xf32>
    %c1 = arith.constant 1 : index
    %c0_75 = arith.constant 0 : index
    %c0_76 = arith.constant 0 : index
    %162 = vector.load %arg4[%c1, %c0_75, %c0_76] : memref<2x32x96xbf16, #tpu.memory_space<vmem>>, vector<1x32x96xbf16>
    %163 = vector.shape_cast %162 : vector<1x32x96xbf16> to vector<32x96xbf16>
    %164 = arith.truncf %161 : vector<16x32xf32> to vector<16x32xbf16>
    %cst_77 = arith.constant dense<0.000000e+00> : vector<16x96xf32>
    %165 = tpu.matmul %164, %163, %cst_77 {dimension_numbers = #tpu.dot_dimension_numbers<[1], [0], [0], [1], [0, 0, 1, 1], [], []>} : vector<16x32xbf16>, vector<32x96xbf16>, vector<16x96xf32> -> vector<16x96xf32>
    %c1_78 = arith.constant 1 : index
    %c0_79 = arith.constant 0 : index
    %c0_80 = arith.constant 0 : index
    %166 = vector.load %arg5[%c1_78, %c0_79, %c0_80] : memref<2x1x96xf32, #tpu.memory_space<vmem>>, vector<1x1x96xf32>
    %167 = vector.shape_cast %166 : vector<1x1x96xf32> to vector<1x96xf32>
    %168 = vector.broadcast %167 : vector<1x96xf32> to vector<16x96xf32>
    %169 = arith.addf %165, %168 : vector<16x96xf32>
    %170 = vector.extract_strided_slice %169 {offsets = [0, 0], sizes = [16, 16], strides = [1, 1]} : vector<16x96xf32> to vector<16x16xf32>
    %171 = vector.extract_strided_slice %169 {offsets = [0, 32], sizes = [16, 16], strides = [1, 1]} : vector<16x96xf32> to vector<16x16xf32>
    %172 = vector.extract_strided_slice %169 {offsets = [0, 64], sizes = [16, 16], strides = [1, 1]} : vector<16x96xf32> to vector<16x16xf32>
    %173 = arith.truncf %170 : vector<16x16xf32> to vector<16x16xbf16>
    %174 = arith.truncf %171 : vector<16x16xf32> to vector<16x16xbf16>
    %cst_81 = arith.constant dense<0.000000e+00> : vector<16x16xf32>
    %175 = tpu.matmul %173, %174, %cst_81 {dimension_numbers = #tpu.dot_dimension_numbers<[1], [1], [0], [0], [0, 0, 1, 0], [], []>} : vector<16x16xbf16>, vector<16x16xbf16>, vector<16x16xf32> -> vector<16x16xf32>
    %cst_82 = arith.constant 2.500000e-01 : f32
    %176 = vector.broadcast %cst_82 : f32 to vector<16x16xf32>
    %177 = arith.mulf %175, %176 : vector<16x16xf32>
    %178 = arith.addf %177, %23 : vector<16x16xf32>
    %cst_83 = arith.constant dense<0xFF800000> : vector<16xf32>
    %179 = vector.multi_reduction <maximumf>, %178, %cst_83 [1] : vector<16x16xf32> to vector<16xf32>
    %180 = vector.shape_cast %179 : vector<16xf32> to vector<16x1xf32>
    %181 = vector.broadcast %180 : vector<16x1xf32> to vector<16x16xf32>
    %182 = arith.subf %178, %181 : vector<16x16xf32>
    %183 = math.exp %182 : vector<16x16xf32>
    %cst_84 = arith.constant dense<0.000000e+00> : vector<16xf32>
    %184 = vector.multi_reduction <add>, %183, %cst_84 [1] : vector<16x16xf32> to vector<16xf32>
    %185 = vector.shape_cast %184 : vector<16xf32> to vector<16x1xf32>
    %186 = vector.broadcast %185 : vector<16x1xf32> to vector<16x16xf32>
    %187 = arith.divf %183, %186 : vector<16x16xf32>
    %188 = arith.truncf %187 : vector<16x16xf32> to vector<16x16xbf16>
    %189 = arith.truncf %172 : vector<16x16xf32> to vector<16x16xbf16>
    %cst_85 = arith.constant dense<0.000000e+00> : vector<16x16xf32>
    %190 = tpu.matmul %188, %189, %cst_85 {dimension_numbers = #tpu.dot_dimension_numbers<[1], [0], [0], [1], [0, 0, 1, 1], [], []>} : vector<16x16xbf16>, vector<16x16xbf16>, vector<16x16xf32> -> vector<16x16xf32>
    %191 = vector.extract_strided_slice %169 {offsets = [0, 16], sizes = [16, 16], strides = [1, 1]} : vector<16x96xf32> to vector<16x16xf32>
    %192 = vector.extract_strided_slice %169 {offsets = [0, 48], sizes = [16, 16], strides = [1, 1]} : vector<16x96xf32> to vector<16x16xf32>
    %193 = vector.extract_strided_slice %169 {offsets = [0, 80], sizes = [16, 16], strides = [1, 1]} : vector<16x96xf32> to vector<16x16xf32>
    %194 = arith.truncf %191 : vector<16x16xf32> to vector<16x16xbf16>
    %195 = arith.truncf %192 : vector<16x16xf32> to vector<16x16xbf16>
    %cst_86 = arith.constant dense<0.000000e+00> : vector<16x16xf32>
    %196 = tpu.matmul %194, %195, %cst_86 {dimension_numbers = #tpu.dot_dimension_numbers<[1], [1], [0], [0], [0, 0, 1, 0], [], []>} : vector<16x16xbf16>, vector<16x16xbf16>, vector<16x16xf32> -> vector<16x16xf32>
    %cst_87 = arith.constant 2.500000e-01 : f32
    %197 = vector.broadcast %cst_87 : f32 to vector<16x16xf32>
    %198 = arith.mulf %196, %197 : vector<16x16xf32>
    %199 = arith.addf %198, %23 : vector<16x16xf32>
    %cst_88 = arith.constant dense<0xFF800000> : vector<16xf32>
    %200 = vector.multi_reduction <maximumf>, %199, %cst_88 [1] : vector<16x16xf32> to vector<16xf32>
    %201 = vector.shape_cast %200 : vector<16xf32> to vector<16x1xf32>
    %202 = vector.broadcast %201 : vector<16x1xf32> to vector<16x16xf32>
    %203 = arith.subf %199, %202 : vector<16x16xf32>
    %204 = math.exp %203 : vector<16x16xf32>
    %cst_89 = arith.constant dense<0.000000e+00> : vector<16xf32>
    %205 = vector.multi_reduction <add>, %204, %cst_89 [1] : vector<16x16xf32> to vector<16xf32>
    %206 = vector.shape_cast %205 : vector<16xf32> to vector<16x1xf32>
    %207 = vector.broadcast %206 : vector<16x1xf32> to vector<16x16xf32>
    %208 = arith.divf %204, %207 : vector<16x16xf32>
    %209 = arith.truncf %208 : vector<16x16xf32> to vector<16x16xbf16>
    %210 = arith.truncf %193 : vector<16x16xf32> to vector<16x16xbf16>
    %cst_90 = arith.constant dense<0.000000e+00> : vector<16x16xf32>
    %211 = tpu.matmul %209, %210, %cst_90 {dimension_numbers = #tpu.dot_dimension_numbers<[1], [0], [0], [1], [0, 0, 1, 1], [], []>} : vector<16x16xbf16>, vector<16x16xbf16>, vector<16x16xf32> -> vector<16x16xf32>
    %212 = tpu.concatenate %190, %211 in 1 : vector<16x16xf32>, vector<16x16xf32> -> vector<16x32xf32>
    %c1_91 = arith.constant 1 : index
    %c0_92 = arith.constant 0 : index
    %c0_93 = arith.constant 0 : index
    %213 = vector.load %arg6[%c1_91, %c0_92, %c0_93] : memref<2x32x32xbf16, #tpu.memory_space<vmem>>, vector<1x32x32xbf16>
    %214 = vector.shape_cast %213 : vector<1x32x32xbf16> to vector<32x32xbf16>
    %215 = arith.truncf %212 : vector<16x32xf32> to vector<16x32xbf16>
    %cst_94 = arith.constant dense<0.000000e+00> : vector<16x32xf32>
    %216 = tpu.matmul %215, %214, %cst_94 {dimension_numbers = #tpu.dot_dimension_numbers<[1], [0], [0], [1], [0, 0, 1, 1], [], []>} : vector<16x32xbf16>, vector<32x32xbf16>, vector<16x32xf32> -> vector<16x32xf32>
    %c1_95 = arith.constant 1 : index
    %c0_96 = arith.constant 0 : index
    %c0_97 = arith.constant 0 : index
    %217 = vector.load %arg7[%c1_95, %c0_96, %c0_97] : memref<2x1x32xf32, #tpu.memory_space<vmem>>, vector<1x1x32xf32>
    %218 = vector.shape_cast %217 : vector<1x1x32xf32> to vector<1x32xf32>
    %219 = vector.broadcast %218 : vector<1x32xf32> to vector<16x32xf32>
    %220 = arith.addf %216, %219 : vector<16x32xf32>
    %221 = arith.addf %220, %161 : vector<16x32xf32>
    %c1_98 = arith.constant 1 : index
    %c0_99 = arith.constant 0 : index
    %c0_100 = arith.constant 0 : index
    %222 = vector.load %arg8[%c1_98, %c0_99, %c0_100] : memref<2x1x32xf32, #tpu.memory_space<vmem>>, vector<1x1x32xf32>
    %223 = vector.shape_cast %222 : vector<1x1x32xf32> to vector<1x32xf32>
    %c1_101 = arith.constant 1 : index
    %c0_102 = arith.constant 0 : index
    %c0_103 = arith.constant 0 : index
    %224 = vector.load %arg9[%c1_101, %c0_102, %c0_103] : memref<2x1x32xf32, #tpu.memory_space<vmem>>, vector<1x1x32xf32>
    %225 = vector.shape_cast %224 : vector<1x1x32xf32> to vector<1x32xf32>
    %cst_104 = arith.constant dense<0.000000e+00> : vector<16xf32>
    %226 = vector.multi_reduction <add>, %221, %cst_104 [1] : vector<16x32xf32> to vector<16xf32>
    %227 = vector.shape_cast %226 : vector<16xf32> to vector<16x1xf32>
    %cst_105 = arith.constant 3.200000e+01 : f32
    %228 = vector.broadcast %cst_105 : f32 to vector<16x1xf32>
    %229 = arith.divf %227, %228 : vector<16x1xf32>
    %230 = vector.broadcast %229 : vector<16x1xf32> to vector<16x32xf32>
    %231 = arith.subf %221, %230 : vector<16x32xf32>
    %232 = arith.mulf %231, %231 : vector<16x32xf32>
    %cst_106 = arith.constant dense<0.000000e+00> : vector<16xf32>
    %233 = vector.multi_reduction <add>, %232, %cst_106 [1] : vector<16x32xf32> to vector<16xf32>
    %234 = vector.shape_cast %233 : vector<16xf32> to vector<16x1xf32>
    %cst_107 = arith.constant 3.200000e+01 : f32
    %235 = vector.broadcast %cst_107 : f32 to vector<16x1xf32>
    %236 = arith.divf %234, %235 : vector<16x1xf32>
    %cst_108 = arith.constant 9.99999996E-13 : f32
    %237 = vector.broadcast %cst_108 : f32 to vector<16x1xf32>
    %238 = arith.addf %236, %237 : vector<16x1xf32>
    %239 = math.rsqrt %238 : vector<16x1xf32>
    %240 = vector.broadcast %239 : vector<16x1xf32> to vector<16x32xf32>
    %241 = arith.mulf %231, %240 : vector<16x32xf32>
    %242 = vector.broadcast %223 : vector<1x32xf32> to vector<16x32xf32>
    %243 = arith.mulf %241, %242 : vector<16x32xf32>
    %244 = vector.broadcast %225 : vector<1x32xf32> to vector<16x32xf32>
    %245 = arith.addf %243, %244 : vector<16x32xf32>
    %c1_109 = arith.constant 1 : index
    %c0_110 = arith.constant 0 : index
    %c0_111 = arith.constant 0 : index
    %246 = vector.load %arg10[%c1_109, %c0_110, %c0_111] : memref<2x32x64xbf16, #tpu.memory_space<vmem>>, vector<1x32x64xbf16>
    %247 = vector.shape_cast %246 : vector<1x32x64xbf16> to vector<32x64xbf16>
    %248 = arith.truncf %245 : vector<16x32xf32> to vector<16x32xbf16>
    %cst_112 = arith.constant dense<0.000000e+00> : vector<16x64xf32>
    %249 = tpu.matmul %248, %247, %cst_112 {dimension_numbers = #tpu.dot_dimension_numbers<[1], [0], [0], [1], [0, 0, 1, 1], [], []>} : vector<16x32xbf16>, vector<32x64xbf16>, vector<16x64xf32> -> vector<16x64xf32>
    %c1_113 = arith.constant 1 : index
    %c0_114 = arith.constant 0 : index
    %c0_115 = arith.constant 0 : index
    %250 = vector.load %arg11[%c1_113, %c0_114, %c0_115] : memref<2x1x64xf32, #tpu.memory_space<vmem>>, vector<1x1x64xf32>
    %251 = vector.shape_cast %250 : vector<1x1x64xf32> to vector<1x64xf32>
    %252 = vector.broadcast %251 : vector<1x64xf32> to vector<16x64xf32>
    %253 = arith.addf %249, %252 : vector<16x64xf32>
    %cst_116 = arith.constant 5.000000e-01 : f32
    %254 = vector.broadcast %cst_116 : f32 to vector<16x64xf32>
    %255 = arith.mulf %254, %253 : vector<16x64xf32>
    %cst_117 = arith.constant 4.471500e-02 : f32
    %256 = vector.broadcast %cst_117 : f32 to vector<16x64xf32>
    %257 = arith.mulf %256, %253 : vector<16x64xf32>
    %258 = arith.mulf %257, %253 : vector<16x64xf32>
    %259 = arith.mulf %258, %253 : vector<16x64xf32>
    %260 = arith.addf %253, %259 : vector<16x64xf32>
    %cst_118 = arith.constant 0.797884583 : f32
    %261 = vector.broadcast %cst_118 : f32 to vector<16x64xf32>
    %262 = arith.mulf %261, %260 : vector<16x64xf32>
    %263 = math.tanh %262 : vector<16x64xf32>
    %cst_119 = arith.constant 1.000000e+00 : f32
    %264 = vector.broadcast %cst_119 : f32 to vector<16x64xf32>
    %265 = arith.addf %264, %263 : vector<16x64xf32>
    %266 = arith.mulf %255, %265 : vector<16x64xf32>
    %c1_120 = arith.constant 1 : index
    %c0_121 = arith.constant 0 : index
    %c0_122 = arith.constant 0 : index
    %267 = vector.load %arg12[%c1_120, %c0_121, %c0_122] : memref<2x64x32xbf16, #tpu.memory_space<vmem>>, vector<1x64x32xbf16>
    %268 = vector.shape_cast %267 : vector<1x64x32xbf16> to vector<64x32xbf16>
    %269 = arith.truncf %266 : vector<16x64xf32> to vector<16x64xbf16>
    %cst_123 = arith.constant dense<0.000000e+00> : vector<16x32xf32>
    %270 = tpu.matmul %269, %268, %cst_123 {dimension_numbers = #tpu.dot_dimension_numbers<[1], [0], [0], [1], [0, 0, 1, 1], [], []>} : vector<16x64xbf16>, vector<64x32xbf16>, vector<16x32xf32> -> vector<16x32xf32>
    %c1_124 = arith.constant 1 : index
    %c0_125 = arith.constant 0 : index
    %c0_126 = arith.constant 0 : index
    %271 = vector.load %arg13[%c1_124, %c0_125, %c0_126] : memref<2x1x32xf32, #tpu.memory_space<vmem>>, vector<1x1x32xf32>
    %272 = vector.shape_cast %271 : vector<1x1x32xf32> to vector<1x32xf32>
    %273 = vector.broadcast %272 : vector<1x32xf32> to vector<16x32xf32>
    %274 = arith.addf %270, %273 : vector<16x32xf32>
    %275 = arith.addf %274, %245 : vector<16x32xf32>
    %c1_127 = arith.constant 1 : index
    %c0_128 = arith.constant 0 : index
    %c0_129 = arith.constant 0 : index
    %276 = vector.load %arg14[%c1_127, %c0_128, %c0_129] : memref<2x1x32xf32, #tpu.memory_space<vmem>>, vector<1x1x32xf32>
    %277 = vector.shape_cast %276 : vector<1x1x32xf32> to vector<1x32xf32>
    %c1_130 = arith.constant 1 : index
    %c0_131 = arith.constant 0 : index
    %c0_132 = arith.constant 0 : index
    %278 = vector.load %arg15[%c1_130, %c0_131, %c0_132] : memref<2x1x32xf32, #tpu.memory_space<vmem>>, vector<1x1x32xf32>
    %279 = vector.shape_cast %278 : vector<1x1x32xf32> to vector<1x32xf32>
    %cst_133 = arith.constant dense<0.000000e+00> : vector<16xf32>
    %280 = vector.multi_reduction <add>, %275, %cst_133 [1] : vector<16x32xf32> to vector<16xf32>
    %281 = vector.shape_cast %280 : vector<16xf32> to vector<16x1xf32>
    %cst_134 = arith.constant 3.200000e+01 : f32
    %282 = vector.broadcast %cst_134 : f32 to vector<16x1xf32>
    %283 = arith.divf %281, %282 : vector<16x1xf32>
    %284 = vector.broadcast %283 : vector<16x1xf32> to vector<16x32xf32>
    %285 = arith.subf %275, %284 : vector<16x32xf32>
    %286 = arith.mulf %285, %285 : vector<16x32xf32>
    %cst_135 = arith.constant dense<0.000000e+00> : vector<16xf32>
    %287 = vector.multi_reduction <add>, %286, %cst_135 [1] : vector<16x32xf32> to vector<16xf32>
    %288 = vector.shape_cast %287 : vector<16xf32> to vector<16x1xf32>
    %cst_136 = arith.constant 3.200000e+01 : f32
    %289 = vector.broadcast %cst_136 : f32 to vector<16x1xf32>
    %290 = arith.divf %288, %289 : vector<16x1xf32>
    %cst_137 = arith.constant 9.99999996E-13 : f32
    %291 = vector.broadcast %cst_137 : f32 to vector<16x1xf32>
    %292 = arith.addf %290, %291 : vector<16x1xf32>
    %293 = math.rsqrt %292 : vector<16x1xf32>
    %294 = vector.broadcast %293 : vector<16x1xf32> to vector<16x32xf32>
    %295 = arith.mulf %285, %294 : vector<16x32xf32>
    %296 = vector.broadcast %277 : vector<1x32xf32> to vector<16x32xf32>
    %297 = arith.mulf %295, %296 : vector<16x32xf32>
    %298 = vector.broadcast %279 : vector<1x32xf32> to vector<16x32xf32>
    %299 = arith.addf %297, %298 : vector<16x32xf32>
    %c0_138 = arith.constant 0 : index
    %c0_139 = arith.constant 0 : index
    %300 = vector.load %arg22[%c0_138, %c0_139] : memref<16x32xf32, #tpu.memory_space<vmem>>, vector<16x32xf32>
    tpu.vector_store %arg22[%c0_138, %c0_139], %299 {strides = array<i32>} : memref<16x32xf32, #tpu.memory_space<vmem>>, vector<16x32xf32>,
    %301 = tpu.concatenate %49, %70, %187, %208 in 1 : vector<16x16xf32>, vector<16x16xf32>, vector<16x16xf32>, vector<16x16xf32> -> vector<16x64xf32>
    %c0_140 = arith.constant 0 : index
    %c0_141 = arith.constant 0 : index
    %302 = vector.load %arg21[%c0_140, %c0_141] : memref<16x64xf32, #tpu.memory_space<vmem>>, vector<16x64xf32>
    tpu.vector_store %arg21[%c0_140, %c0_141], %301 {strides = array<i32>} : memref<16x64xf32, #tpu.memory_space<vmem>>, vector<16x64xf32>,
    %303 = vector.extract_strided_slice %299 {offsets = [0, 0], sizes = [1, 32], strides = [1, 1]} : vector<16x32xf32> to vector<1x32xf32>
    %304 = vector.extract_strided_slice %299 {offsets = [8, 0], sizes = [1, 32], strides = [1, 1]} : vector<16x32xf32> to vector<1x32xf32>
    %305 = tpu.concatenate %303, %304 in 0 : vector<1x32xf32>, vector<1x32xf32> -> vector<2x32xf32>
    %c0_142 = arith.constant 0 : index
    %c0_143 = arith.constant 0 : index
    %306 = vector.load %arg16[%c0_142, %c0_143] : memref<32x32xbf16, #tpu.memory_space<vmem>>, vector<32x32xbf16>
    %307 = arith.truncf %305 : vector<2x32xf32> to vector<2x32xbf16>
    %cst_144 = arith.constant dense<0.000000e+00> : vector<2x32xf32>
    %308 = tpu.matmul %307, %306, %cst_144 {dimension_numbers = #tpu.dot_dimension_numbers<[1], [0], [0], [1], [0, 0, 1, 1], [], []>} : vector<2x32xbf16>, vector<32x32xbf16>, vector<2x32xf32> -> vector<2x32xf32>
    %c0_145 = arith.constant 0 : index
    %c0_146 = arith.constant 0 : index
    %309 = vector.load %arg17[%c0_145, %c0_146] : memref<1x32xf32, #tpu.memory_space<vmem>>, vector<1x32xf32>
    %310 = vector.broadcast %309 : vector<1x32xf32> to vector<2x32xf32>
    %311 = arith.addf %308, %310 : vector<2x32xf32>
    %312 = math.tanh %311 : vector<2x32xf32>
    %c0_147 = arith.constant 0 : index
    %c0_148 = arith.constant 0 : index
    %313 = vector.load %arg18[%c0_147, %c0_148] : memref<32x128xbf16, #tpu.memory_space<vmem>>, vector<32x128xbf16>
    %314 = arith.truncf %312 : vector<2x32xf32> to vector<2x32xbf16>
    %cst_149 = arith.constant dense<0.000000e+00> : vector<2x128xf32>
    %315 = tpu.matmul %314, %313, %cst_149 {dimension_numbers = #tpu.dot_dimension_numbers<[1], [0], [0], [1], [0, 0, 1, 1], [], []>} : vector<2x32xbf16>, vector<32x128xbf16>, vector<2x128xf32> -> vector<2x128xf32>
    %c0_150 = arith.constant 0 : index
    %c0_151 = arith.constant 0 : index
    %316 = vector.load %arg19[%c0_150, %c0_151] : memref<1x128xf32, #tpu.memory_space<vmem>>, vector<1x128xf32>
    %317 = vector.broadcast %316 : vector<1x128xf32> to vector<2x128xf32>
    %318 = arith.addf %315, %317 : vector<2x128xf32>
    %c0_152 = arith.constant 0 : index
    %c0_153 = arith.constant 0 : index
    %319 = vector.load %arg20[%c0_152, %c0_153] : memref<2x128xf32, #tpu.memory_space<vmem>>, vector<2x128xf32>
    tpu.vector_store %arg20[%c0_152, %c0_153], %318 {strides = array<i32>} : memref<2x128xf32, #tpu.memory_space<vmem>>, vector<2x128xf32>,
    return
  }
}

</mosaic_0001>

<llo_original>
// kernel: tpu_custom_call.1
$region0: #{tpu_custom_call.1}
  #allocation0 [shape = 'u32[]', space=smem, size = 0x4, offset = 0x4, fixed_abs, tag = 'smem constant byte address 0x4 - core index']
  #allocation1 [shape = 'u32[144,128]{1,0:T(1,128)}', space=vmem, size = 0x12000, scoped, tag = 'internal scratch']
  %s0 = inlined_call_operand.hbm [shape: f32[16,32], index: 0, kind: input, shape index: {}]
  %s1 = inlined_call_operand.hbm [shape: f32[16,16], index: 1, kind: input, shape index: {}]
  %s2 = inlined_call_operand.hbm [shape: f32[1,32], index: 2, kind: input, shape index: {}]
  %s3 = inlined_call_operand.hbm [shape: f32[1,32], index: 3, kind: input, shape index: {}]
  %s4 = inlined_call_operand.vmem [shape: bf16[2,32,96], index: 4, kind: input, shape index: {}]
  %s5 = inlined_call_operand.hbm [shape: f32[2,1,96], index: 5, kind: input, shape index: {}]
  %s6 = inlined_call_operand.vmem [shape: bf16[2,32,32], index: 6, kind: input, shape index: {}]
  %s7 = inlined_call_operand.hbm [shape: f32[2,1,32], index: 7, kind: input, shape index: {}]
  %s8 = inlined_call_operand.hbm [shape: f32[2,1,32], index: 8, kind: input, shape index: {}]
  %s9 = inlined_call_operand.hbm [shape: f32[2,1,32], index: 9, kind: input, shape index: {}]
  %s10 = inlined_call_operand.vmem [shape: bf16[2,32,64], index: 10, kind: input, shape index: {}]
  %s11 = inlined_call_operand.hbm [shape: f32[2,1,64], index: 11, kind: input, shape index: {}]
  %s12 = inlined_call_operand.vmem [shape: bf16[2,64,32], index: 12, kind: input, shape index: {}]
  %s13 = inlined_call_operand.hbm [shape: f32[2,1,32], index: 13, kind: input, shape index: {}]
  %s14 = inlined_call_operand.hbm [shape: f32[2,1,32], index: 14, kind: input, shape index: {}]
  %s15 = inlined_call_operand.hbm [shape: f32[2,1,32], index: 15, kind: input, shape index: {}]
  %s16 = inlined_call_operand.vmem [shape: bf16[32,32], index: 16, kind: input, shape index: {}]
  %s17 = inlined_call_operand.hbm [shape: f32[1,32], index: 17, kind: input, shape index: {}]
  %s18 = inlined_call_operand.vmem [shape: bf16[32,128], index: 18, kind: input, shape index: {}]
  %s19 = inlined_call_operand.vmem [shape: f32[1,128], index: 19, kind: input, shape index: {}]
  %s20 = inlined_call_operand.hbm [shape: f32[2,128], index: 20, kind: output, shape index: {0}]
  %s21 = inlined_call_operand.hbm [shape: f32[16,64], index: 21, kind: output, shape index: {1}]
  %s22 = inlined_call_operand.hbm [shape: f32[16,32], index: 22, kind: output, shape index: {2}]
  %23 = xla_tuple %s20, %s21, %s22
  %s24 = sld [smem:[#allocation0]]
  $region158: #{tpu_custom_call.1} parent=0
    _
  %s26 = ssub.s32 1, %s24
  %s27 = scalar_select 0, %s26, %s24
  $region1: #{tpu_custom_call.1} parent=0
    #allocation2 [shape = 'u8[8192]{0}', space=vmem, size = 0x2000, scoped, tag = 'input window, operand 0, single buffered']
    #allocation3 [shape = 's32[1]{0}', space=sflag, size = 0x4, scoped, tag = 'scoped memory for tpu_custom_call.1']
    #allocation4 [shape = 's32[1]{0}', space=sflag, size = 0x4, scoped, tag = 'scoped memory for tpu_custom_call.1']
    #allocation5 [shape = 'u8[8192]{0}', space=vmem, size = 0x2000, scoped, tag = 'input window, operand 1, single buffered']
    #allocation6 [shape = 's32[1]{0}', space=sflag, size = 0x4, scoped, tag = 'scoped memory for tpu_custom_call.1']
    #allocation7 [shape = 'u8[512]{0}', space=vmem, size = 0x400, scoped, tag = 'input window, operand 2, single buffered']
    #allocation8 [shape = 'u8[512]{0}', space=vmem, size = 0x400, scoped, tag = 'input window, operand 3, single buffered']
    #allocation9 [shape = 's32[1]{0}', space=sflag, size = 0x4, scoped, tag = 'scoped memory for tpu_custom_call.1']
    #allocation10 [shape = 'u8[1024]{0}', space=vmem, size = 0x400, scoped, tag = 'input window, operand 5, single buffered']
    #allocation11 [shape = 'u8[1024]{0}', space=vmem, size = 0x400, scoped, tag = 'input window, operand 7, single buffered']
    #allocation12 [shape = 's32[1]{0}', space=sflag, size = 0x4, scoped, tag = 'scoped memory for tpu_custom_call.1']
    #allocation13 [shape = 'u8[1024]{0}', space=vmem, size = 0x400, scoped, tag = 'input window, operand 8, single buffered']
    #allocation14 [shape = 'u8[1024]{0}', space=vmem, size = 0x400, scoped, tag = 'input window, operand 9, single buffered']
    #allocation15 [shape = 's32[1]{0}', space=sflag, size = 0x4, scoped, tag = 'scoped memory for tpu_custom_call.1']
    #allocation16 [shape = 'u8[1024]{0}', space=vmem, size = 0x400, scoped, tag = 'input window, operand 11, single buffered']
    #allocation17 [shape = 'u8[1024]{0}', space=vmem, size = 0x400, scoped, tag = 'input window, operand 13, single buffered']
    #allocation18 [shape = 's32[1]{0}', space=sflag, size = 0x4, scoped, tag = 'scoped memory for tpu_custom_call.1']
    #allocation19 [shape = 'u8[1024]{0}', space=vmem, size = 0x400, scoped, tag = 'input window, operand 14, single buffered']
    #allocation20 [shape = 'u8[1024]{0}', space=vmem, size = 0x400, scoped, tag = 'input window, operand 15, single buffered']
    #allocation21 [shape = 's32[1]{0}', space=sflag, size = 0x4, scoped, tag = 'scoped memory for tpu_custom_call.1']
    #allocation22 [shape = 'u8[512]{0}', space=vmem, size = 0x400, scoped, tag = 'input window, operand 17, single buffered']
    #allocation23 [shape = 'u8[1024]{0}', space=vmem, size = 0x400, scoped, tag = 'output window, operand 0, single buffered']
    #allocation24 [shape = 'u8[8192]{0}', space=vmem, size = 0x2000, scoped, tag = 'output window, operand 1, single buffered']
    #allocation25 [shape = 's32[1]{0}', space=sflag, size = 0x4, scoped, tag = 'scoped memory for tpu_custom_call.1']
    #allocation26 [shape = 'u8[8192]{0}', space=vmem, size = 0x2000, scoped, tag = 'output window, operand 2, single buffered']
    %28 = vsyncpa [#allocation3], 0
    %29 = vsyncpa [#allocation6], 0
    %30 = vsyncpa [#allocation9], 0
    %31 = vsyncpa [#allocation12], 0
    %32 = vsyncpa [#allocation15], 0
    %33 = vsyncpa [#allocation18], 0
    %34 = vsyncpa [#allocation21], 0
    %35 = vsyncpa [#allocation4], 0
    %36 = vsyncpa [#allocation25], 0
    // Predicated region
    $region2: #{tpu_custom_call.1} parent=1 // pred_check
      _
    $region3: #{tpu_custom_call.1} parent=1 // pred_check_branch
      %38 = sbr.rel (0) target = $region5
    $region4: #{tpu_custom_call.1} parent=1 // pred_region
      %s40 = ssub.s32 256, 256
      %41 = vsyncadd [#allocation3], %s40
      %s42 = sshll.u32 [#allocation2], 4
      %s43 = int_to_ptr.vmem [resolvable:$true] %s42
      %48 = dma.hbm_to_vmem [thread:$0]  %s0, 256, %s43, [#allocation3], 128, 128, 8
    $region5: #{tpu_custom_call.1} parent=1 // pred_fallthru
      _
    // Predicated region
    $region6: #{tpu_custom_call.1} parent=1 // pred_check
      _
    $region7: #{tpu_custom_call.1} parent=1 // pred_check_branch
      %50 = sbr.rel (0) target = $region9
    $region8: #{tpu_custom_call.1} parent=1 // pred_region
      %s52 = ssub.s32 256, 256
      %53 = vsyncadd [#allocation6], %s52
      %s54 = sshll.u32 [#allocation5], 4
      %s55 = int_to_ptr.vmem [resolvable:$true] %s54
      %60 = dma.hbm_to_vmem [thread:$0]  %s1, 256, %s55, [#allocation6], 128, 128, 8
    $region9: #{tpu_custom_call.1} parent=1 // pred_fallthru
      _
    // Predicated region
    $region10: #{tpu_custom_call.1} parent=1 // pred_check
      _
    $region11: #{tpu_custom_call.1} parent=1 // pred_check_branch
      %62 = sbr.rel (0) target = $region13
    $region12: #{tpu_custom_call.1} parent=1 // pred_region
      %s64 = ssub.s32 16, 16
      %65 = vsyncadd [#allocation6], %s64
      %s67 = sshll.u32 [#allocation7], 4
      %s68 = int_to_ptr.vmem [resolvable:$true] %s67
      %70 = dma.hbm_to_vmem [thread:$0]  %s2, 16, %s68, [#allocation6]
    $region13: #{tpu_custom_call.1} parent=1 // pred_fallthru
      _
    // Predicated region
    $region14: #{tpu_custom_call.1} parent=1 // pred_check
      _
    $region15: #{tpu_custom_call.1} parent=1 // pred_check_branch
      %72 = sbr.rel (0) target = $region17
    $region16: #{tpu_custom_call.1} parent=1 // pred_region
      %s74 = ssub.s32 16, 16
      %75 = vsyncadd [#allocation9], %s74
      %s77 = sshll.u32 [#allocation8], 4
      %s78 = int_to_ptr.vmem [resolvable:$true] %s77
      %80 = dma.hbm_to_vmem [thread:$0]  %s3, 16, %s78, [#allocation9]
    $region17: #{tpu_custom_call.1} parent=1 // pred_fallthru
      _
    // Predicated region
    $region18: #{tpu_custom_call.1} parent=1 // pred_check
      _
    $region19: #{tpu_custom_call.1} parent=1 // pred_check_branch
      %82 = sbr.rel (0) target = $region21
    $region20: #{tpu_custom_call.1} parent=1 // pred_region
      _
    $region21: #{tpu_custom_call.1} parent=1 // pred_fallthru
      _
    // Predicated region
    $region22: #{tpu_custom_call.1} parent=1 // pred_check
      _
    $region23: #{tpu_custom_call.1} parent=1 // pred_check_branch
      %84 = sbr.rel (0) target = $region25
    $region24: #{tpu_custom_call.1} parent=1 // pred_region
      %s86 = ssub.s32 32, 32
      %87 = vsyncadd [#allocation9], %s86
      %s88 = sshll.u32 [#allocation10], 4
      %s89 = int_to_ptr.vmem [resolvable:$true] %s88
      %94 = dma.hbm_to_vmem [thread:$0]  %s5, 32, %s89, [#allocation9], 16, 16, 1
    $region25: #{tpu_custom_call.1} parent=1 // pred_fallthru
      _
    // Predicated region
    $region26: #{tpu_custom_call.1} parent=1 // pred_check
      _
    $region27: #{tpu_custom_call.1} parent=1 // pred_check_branch
      %96 = sbr.rel (0) target = $region29
    $region28: #{tpu_custom_call.1} parent=1 // pred_region
      _
    $region29: #{tpu_custom_call.1} parent=1 // pred_fallthru
      _
    // Predicated region
    $region30: #{tpu_custom_call.1} parent=1 // pred_check
      _
    $region31: #{tpu_custom_call.1} parent=1 // pred_check_branch
      %98 = sbr.rel (0) target = $region33
    $region32: #{tpu_custom_call.1} parent=1 // pred_region
      %s100 = ssub.s32 32, 32
      %101 = vsyncadd [#allocation12], %s100
      %s102 = sshll.u32 [#allocation11], 4
      %s103 = int_to_ptr.vmem [resolvable:$true] %s102
      %108 = dma.hbm_to_vmem [thread:$0]  %s7, 32, %s103, [#allocation12], 16, 16, 1
    $region33: #{tpu_custom_call.1} parent=1 // pred_fallthru
      _
    // Predicated region
    $region34: #{tpu_custom_call.1} parent=1 // pred_check
      _
    $region35: #{tpu_custom_call.1} parent=1 // pred_check_branch
      %110 = sbr.rel (0) target = $region37
    $region36: #{tpu_custom_call.1} parent=1 // pred_region
      %s112 = ssub.s32 32, 32
      %113 = vsyncadd [#allocation12], %s112
      %s114 = sshll.u32 [#allocation13], 4
      %s115 = int_to_ptr.vmem [resolvable:$true] %s114
      %120 = dma.hbm_to_vmem [thread:$0]  %s8, 32, %s115, [#allocation12], 16, 16, 1
    $region37: #{tpu_custom_call.1} parent=1 // pred_fallthru
      _
    // Predicated region
    $region38: #{tpu_custom_call.1} parent=1 // pred_check
      _
    $region39: #{tpu_custom_call.1} parent=1 // pred_check_branch
      %122 = sbr.rel (0) target = $region41
    $region40: #{tpu_custom_call.1} parent=1 // pred_region
      %s124 = ssub.s32 32, 32
      %125 = vsyncadd [#allocation15], %s124
      %s126 = sshll.u32 [#allocation14], 4
      %s127 = int_to_ptr.vmem [resolvable:$true] %s126
      %132 = dma.hbm_to_vmem [thread:$0]  %s9, 32, %s127, [#allocation15], 16, 16, 1
    $region41: #{tpu_custom_call.1} parent=1 // pred_fallthru
      _
    // Predicated region
    $region42: #{tpu_custom_call.1} parent=1 // pred_check
      _
    $region43: #{tpu_custom_call.1} parent=1 // pred_check_branch
      %134 = sbr.rel (0) target = $region45
    $region44: #{tpu_custom_call.1} parent=1 // pred_region
      _
    $region45: #{tpu_custom_call.1} parent=1 // pred_fallthru
      _
    // Predicated region
    $region46: #{tpu_custom_call.1} parent=1 // pred_check
      _
    $region47: #{tpu_custom_call.1} parent=1 // pred_check_branch
      %136 = sbr.rel (0) target = $region49
    $region48: #{tpu_custom_call.1} parent=1 // pred_region
      %s138 = ssub.s32 32, 32
      %139 = vsyncadd [#allocation15], %s138
      %s140 = sshll.u32 [#allocation16], 4
      %s141 = int_to_ptr.vmem [resolvable:$true] %s140
      %146 = dma.hbm_to_vmem [thread:$0]  %s11, 32, %s141, [#allocation15], 16, 16, 1
    $region49: #{tpu_custom_call.1} parent=1 // pred_fallthru
      _
    // Predicated region
    $region50: #{tpu_custom_call.1} parent=1 // pred_check
      _
    $region51: #{tpu_custom_call.1} parent=1 // pred_check_branch
      %148 = sbr.rel (0) target = $region53
    $region52: #{tpu_custom_call.1} parent=1 // pred_region
      _
    $region53: #{tpu_custom_call.1} parent=1 // pred_fallthru
      _
    // Predicated region
    $region54: #{tpu_custom_call.1} parent=1 // pred_check
      _
    $region55: #{tpu_custom_call.1} parent=1 // pred_check_branch
      %150 = sbr.rel (0) target = $region57
    $region56: #{tpu_custom_call.1} parent=1 // pred_region
      %s152 = ssub.s32 32, 32
      %153 = vsyncadd [#allocation18], %s152
      %s154 = sshll.u32 [#allocation17], 4
      %s155 = int_to_ptr.vmem [resolvable:$true] %s154
      %160 = dma.hbm_to_vmem [thread:$0]  %s13, 32, %s155, [#allocation18], 16, 16, 1
    $region57: #{tpu_custom_call.1} parent=1 // pred_fallthru
      _
    // Predicated region
    $region58: #{tpu_custom_call.1} parent=1 // pred_check
      _
    $region59: #{tpu_custom_call.1} parent=1 // pred_check_branch
      %162 = sbr.rel (0) target = $region61
    $region60: #{tpu_custom_call.1} parent=1 // pred_region
      %s164 = ssub.s32 32, 32
      %165 = vsyncadd [#allocation18], %s164
      %s166 = sshll.u32 [#allocation19], 4
      %s167 = int_to_ptr.vmem [resolvable:$true] %s166
      %172 = dma.hbm_to_vmem [thread:$0]  %s14, 32, %s167, [#allocation18], 16, 16, 1
    $region61: #{tpu_custom_call.1} parent=1 // pred_fallthru
      _
    // Predicated region
    $region62: #{tpu_custom_call.1} parent=1 // pred_check
      _
    $region63: #{tpu_custom_call.1} parent=1 // pred_check_branch
      %174 = sbr.rel (0) target = $region65
    $region64: #{tpu_custom_call.1} parent=1 // pred_region
      %s176 = ssub.s32 32, 32
      %177 = vsyncadd [#allocation21], %s176
      %s178 = sshll.u32 [#allocation20], 4
      %s179 = int_to_ptr.vmem [resolvable:$true] %s178
      %184 = dma.hbm_to_vmem [thread:$0]  %s15, 32, %s179, [#allocation21], 16, 16, 1
    $region65: #{tpu_custom_call.1} parent=1 // pred_fallthru
      _
    // Predicated region
    $region66: #{tpu_custom_call.1} parent=1 // pred_check
      _
    $region67: #{tpu_custom_call.1} parent=1 // pred_check_branch
      %186 = sbr.rel (0) target = $region69
    $region68: #{tpu_custom_call.1} parent=1 // pred_region
      _
    $region69: #{tpu_custom_call.1} parent=1 // pred_fallthru
      _
    // Predicated region
    $region70: #{tpu_custom_call.1} parent=1 // pred_check
      _
    $region71: #{tpu_custom_call.1} parent=1 // pred_check_branch
      %188 = sbr.rel (0) target = $region73
    $region72: #{tpu_custom_call.1} parent=1 // pred_region
      %s190 = ssub.s32 16, 16
      %191 = vsyncadd [#allocation21], %s190
      %s193 = sshll.u32 [#allocation22], 4
      %s194 = int_to_ptr.vmem [resolvable:$true] %s193
      %196 = dma.hbm_to_vmem [thread:$0]  %s17, 16, %s194, [#allocation21]
    $region73: #{tpu_custom_call.1} parent=1 // pred_fallthru
      _
    // Predicated region
    $region74: #{tpu_custom_call.1} parent=1 // pred_check
      _
    $region75: #{tpu_custom_call.1} parent=1 // pred_check_branch
      %198 = sbr.rel (0) target = $region77
    $region76: #{tpu_custom_call.1} parent=1 // pred_region
      _
    $region77: #{tpu_custom_call.1} parent=1 // pred_fallthru
      _
    // Predicated region
    $region78: #{tpu_custom_call.1} parent=1 // pred_check
      _
    $region79: #{tpu_custom_call.1} parent=1 // pred_check_branch
      %200 = sbr.rel (0) target = $region81
    $region80: #{tpu_custom_call.1} parent=1 // pred_region
      _
    $region81: #{tpu_custom_call.1} parent=1 // pred_fallthru
      _
    // Predicated region
    $region82: #{tpu_custom_call.1} parent=1 // pred_check
      _
    $region83: #{tpu_custom_call.1} parent=1 // pred_check_branch
      %202 = sbr.rel (0) target = $region85
    $region84: #{tpu_custom_call.1} parent=1 // pred_region
      %203 = dma.done [#allocation3], 256
    $region85: #{tpu_custom_call.1} parent=1 // pred_fallthru
      _
    // Predicated region
    $region86: #{tpu_custom_call.1} parent=1 // pred_check
      _
    $region87: #{tpu_custom_call.1} parent=1 // pred_check_branch
      %205 = sbr.rel (0) target = $region89
    $region88: #{tpu_custom_call.1} parent=1 // pred_region
      %206 = dma.done [#allocation6], 256
    $region89: #{tpu_custom_call.1} parent=1 // pred_fallthru
      _
    // Predicated region
    $region90: #{tpu_custom_call.1} parent=1 // pred_check
      _
    $region91: #{tpu_custom_call.1} parent=1 // pred_check_branch
      %208 = sbr.rel (0) target = $region93
    $region92: #{tpu_custom_call.1} parent=1 // pred_region
      %209 = dma.done [#allocation6], 16
    $region93: #{tpu_custom_call.1} parent=1 // pred_fallthru
      _
    // Predicated region
    $region94: #{tpu_custom_call.1} parent=1 // pred_check
      _
    $region95: #{tpu_custom_call.1} parent=1 // pred_check_branch
      %211 = sbr.rel (0) target = $region97
    $region96: #{tpu_custom_call.1} parent=1 // pred_region
      %212 = dma.done [#allocation9], 16
    $region97: #{tpu_custom_call.1} parent=1 // pred_fallthru
      _
    // Predicated region
    $region98: #{tpu_custom_call.1} parent=1 // pred_check
      _
    $region99: #{tpu_custom_call.1} parent=1 // pred_check_branch
      %214 = sbr.rel (0) target = $region101
    $region100: #{tpu_custom_call.1} parent=1 // pred_region
      %215 = dma.done [#allocation9], 32
    $region101: #{tpu_custom_call.1} parent=1 // pred_fallthru
      _
    // Predicated region
    $region102: #{tpu_custom_call.1} parent=1 // pred_check
      _
    $region103: #{tpu_custom_call.1} parent=1 // pred_check_branch
      %217 = sbr.rel (0) target = $region105
    $region104: #{tpu_custom_call.1} parent=1 // pred_region
      %218 = dma.done [#allocation12], 32
    $region105: #{tpu_custom_call.1} parent=1 // pred_fallthru
      _
    // Predicated region
    $region106: #{tpu_custom_call.1} parent=1 // pred_check
      _
    $region107: #{tpu_custom_call.1} parent=1 // pred_check_branch
      %220 = sbr.rel (0) target = $region109
    $region108: #{tpu_custom_call.1} parent=1 // pred_region
      %221 = dma.done [#allocation12], 32
    $region109: #{tpu_custom_call.1} parent=1 // pred_fallthru
      _
    // Predicated region
    $region110: #{tpu_custom_call.1} parent=1 // pred_check
      _
    $region111: #{tpu_custom_call.1} parent=1 // pred_check_branch
      %223 = sbr.rel (0) target = $region113
    $region112: #{tpu_custom_call.1} parent=1 // pred_region
      %224 = dma.done [#allocation15], 32
    $region113: #{tpu_custom_call.1} parent=1 // pred_fallthru
      _
    // Predicated region
    $region114: #{tpu_custom_call.1} parent=1 // pred_check
      _
    $region115: #{tpu_custom_call.1} parent=1 // pred_check_branch
      %226 = sbr.rel (0) target = $region117
    $region116: #{tpu_custom_call.1} parent=1 // pred_region
      %227 = dma.done [#allocation15], 32
    $region117: #{tpu_custom_call.1} parent=1 // pred_fallthru
      _
    // Predicated region
    $region118: #{tpu_custom_call.1} parent=1 // pred_check
      _
    $region119: #{tpu_custom_call.1} parent=1 // pred_check_branch
      %229 = sbr.rel (0) target = $region121
    $region120: #{tpu_custom_call.1} parent=1 // pred_region
      %230 = dma.done [#allocation18], 32
    $region121: #{tpu_custom_call.1} parent=1 // pred_fallthru
      _
    // Predicated region
    $region122: #{tpu_custom_call.1} parent=1 // pred_check
      _
    $region123: #{tpu_custom_call.1} parent=1 // pred_check_branch
      %232 = sbr.rel (0) target = $region125
    $region124: #{tpu_custom_call.1} parent=1 // pred_region
      %233 = dma.done [#allocation18], 32
    $region125: #{tpu_custom_call.1} parent=1 // pred_fallthru
      _
    // Predicated region
    $region126: #{tpu_custom_call.1} parent=1 // pred_check
      _
    $region127: #{tpu_custom_call.1} parent=1 // pred_check_branch
      %235 = sbr.rel (0) target = $region129
    $region128: #{tpu_custom_call.1} parent=1 // pred_region
      %236 = dma.done [#allocation21], 32
    $region129: #{tpu_custom_call.1} parent=1 // pred_fallthru
      _
    // Predicated region
    $region130: #{tpu_custom_call.1} parent=1 // pred_check
      _
    $region131: #{tpu_custom_call.1} parent=1 // pred_check_branch
      %238 = sbr.rel (0) target = $region133
    $region132: #{tpu_custom_call.1} parent=1 // pred_region
      %239 = dma.done [#allocation21], 16
    $region133: #{tpu_custom_call.1} parent=1 // pred_fallthru
      _
    %v241 = vld [vmem:[#allocation2] sm:$0xff]
    %v242 = vld [vmem:[#allocation2 + $0x8] sm:$0xff]
    %v243 = vld [vmem:[#allocation7] sm:$0x1]
    %v244 = vld [vmem:[#allocation8] sm:$0x1]
    %vm245 = vcmask 261120
    %v246 = vsel %vm245, %v241, 0.0
    %247 = vadd.xlane.f32.xlu0 %v246
    %v248 = vpop.xlane.xlu0 %247
    %v249 = vsel %vm245, %v242, 0.0
    %250 = vadd.xlane.f32.xlu0 %v249
    %v251 = vpop.xlane.xlu0 %250
    %v252 = vrcp.pop 32.0
    %v253 = vmul.f32 %v248, %v252
    %v254 = vmul.f32 %v251, %v252
    %v255 = vsub.f32 %v241, %v253
    %v256 = vsub.f32 %v242, %v254
    %v257 = vmul.f32 %v255, %v255
    %v258 = vmul.f32 %v256, %v256
    %v259 = vsel %vm245, %v257, 0.0
    %260 = vadd.xlane.f32.xlu0 %v259
    %v261 = vpop.xlane.xlu0 %260
    %v262 = vsel %vm245, %v258, 0.0
    %263 = vadd.xlane.f32.xlu0 %v262
    %v264 = vpop.xlane.xlu0 %263
    %v265 = vmul.f32 %v261, %v252
    %v266 = vmul.f32 %v264, %v252
    %v267 = vadd.f32 %v265, 1e-12
    %v268 = vadd.f32 %v266, 1e-12
    %v269 = vrsqrt.pop %v267
    %v270 = vrsqrt.pop %v268
    %v271 = vmul.f32 %v255, %v269
    %v272 = vmul.f32 %v256, %v270
    %v274 = vlaneseq
    %v275 = vshrl.u32 %v274, 7
    %v276 = vsub.s32 0, %v275
    %v277 = vrot.slane %v243, %v276
    %v279 = vmul.f32 %v271, %v277
    %v280 = vmul.f32 %v272, %v277
    %v282 = vlaneseq
    %v283 = vshrl.u32 %v282, 7
    %v284 = vsub.s32 0, %v283
    %v285 = vrot.slane %v244, %v284
    %v287 = vadd.f32 %v279, %v285
    %v288 = vadd.f32 %v280, %v285
    %v289 = vld [vmem:[#allocation5] sm:$0xff]
    %v290 = vld [vmem:[#allocation5 + $0x8] sm:$0xff]
    %v291 = vld [vmem:[%s4] sm:$0xf]
    %v292 = vld [vmem:[%s4 + $0x4] sm:$0xf]
    %v293 = vld [vmem:[%s4 + $0x8] sm:$0xf]
    %v294 = vld [vmem:[%s4 + $0xc] sm:$0xf]
    %v295 = vpack.c.bf16 %v288, %v287
    %v296 = vld [vmem:[#allocation10] sm:$0x1]
    %v298 = vlaneseq
    %v299 = vshrl.u32 %v298, 7
    %v300 = vsub.s32 0, %v299
    %v301 = vrot.slane %v296, %v300
    %v307 = vunpack.c.l.b16 %v291
    %v308 = vunpack.c.l.b16 %v292
    %v309 = vunpack.c.l.b16 %v293
    %v310 = vunpack.c.l.b16 %v294
    %v311 = vpack.c.b16 %v308, %v307
    %v312 = vpack.c.b16 %v310, %v309
    %v316 = vsel %vm245, %v295, 0
    %318 = vmatprep.subr.bf16.mxu0 0
    %319 = vmatpush1.bf16.msra.mxu0 %v311
    %320 = vmatprep.subr.bf16.mxu0 0
    %321 = vmatpush1.bf16.msra.mxu0 %v312
    %322 = vmatprep.subr.bf16.mxu0 0
    %323 = vmatpush1.bf16.msra.mxu0 0
    %324 = vmatprep.subr.bf16.mxu0 0
    %325 = vmatpush1.bf16.msra.mxu0 0
    %326 = vmatprep.subr.bf16.mxu0 0
    %327 = vmatpush1.bf16.msra.mxu0 0
    %328 = vmatprep.subr.bf16.mxu0 0
    %329 = vmatpush1.bf16.msra.mxu0 0
    %330 = vmatprep.subr.bf16.mxu0 0
    %331 = vmatpush1.bf16.msra.mxu0 0
    %332 = vmatprep.subr.bf16.mxu0 0
    %333 = vmatpush1.bf16.msra.mxu0 0
    %334 = vmatprep.subr.bf16.mxu0 0
    %335 = vmatpush1.bf16.msra.mxu0 0
    %336 = vmatprep.subr.bf16.mxu0 0
    %337 = vmatpush1.bf16.msra.mxu0 0
    %338 = vmatprep.subr.bf16.mxu0 0
    %339 = vmatpush1.bf16.msra.mxu0 0
    %340 = vmatprep.subr.bf16.mxu0 0
    %341 = vmatpush1.bf16.msra.mxu0 0
    %342 = vmatprep.subr.bf16.mxu0 0
    %343 = vmatpush1.bf16.msra.mxu0 0
    %344 = vmatprep.subr.bf16.mxu0 0
    %345 = vmatpush1.bf16.msra.mxu0 0
    %346 = vmatprep.subr.bf16.mxu0 0
    %347 = vmatpush1.bf16.msra.mxu0 0
    %348 = vmatprep.subr.bf16.mxu0 0
    %349 = vmatpush1.bf16.msra.mxu0 0
    %350 = vmatprep.mubr.bf16.mxu0 0
    %351 = vmatmul.mubr.bf16.gmra.mrb[0].mxu0 %v316
    %v352 = vpop.f32.mrb[0].mxu0
    %v353 = vadd.f32 %v301, %v352
    %v354 = vpop.f32.mrb[0].mxu0
    %v355 = vpop.f32.mrb[0].mxu0
    %v356 = vadd.f32 %v301, %v355
    %v357 = vpop.f32.mrb[0].mxu0
    %358 = vdwg.mxu0
    %v359 = vpack.c.bf16 %v356, %v353
    %361 = vrot.lane.b32.xlu0 %v359, 96
    %v362 = vpop.permute.xlu0 %361
    %vm363 = vcmask 130048
    %v365 = vsel %vm363, %v359, 0
    %v368 = vsel %vm363, %v362, 0
    %370 = vmatprep.subr.bf16.mxu0 0
    %371 = vmatpush1.bf16.xpose.msra.mxu0 %v368
    %372 = vmatprep.subr.bf16.mxu0 0
    %373 = vmatpush1.bf16.xpose.msra.mxu0 0
    %374 = vmatprep.subr.bf16.mxu0 0
    %375 = vmatpush1.bf16.xpose.msra.mxu0 0
    %376 = vmatprep.subr.bf16.mxu0 0
    %377 = vmatpush1.bf16.xpose.msra.mxu0 0
    %378 = vmatprep.subr.bf16.mxu0 0
    %379 = vmatpush1.bf16.xpose.msra.mxu0 0
    %380 = vmatprep.subr.bf16.mxu0 0
    %381 = vmatpush1.bf16.xpose.msra.mxu0 0
    %382 = vmatprep.subr.bf16.mxu0 0
    %383 = vmatpush1.bf16.xpose.msra.mxu0 0
    %384 = vmatprep.subr.bf16.mxu0 0
    %385 = vmatpush1.bf16.xpose.msra.mxu0 0
    %386 = vmatprep.subr.bf16.mxu0 0
    %387 = vmatpush1.bf16.xpose.msra.mxu0 0
    %388 = vmatprep.subr.bf16.mxu0 0
    %389 = vmatpush1.bf16.xpose.msra.mxu0 0
    %390 = vmatprep.subr.bf16.mxu0 0
    %391 = vmatpush1.bf16.xpose.msra.mxu0 0
    %392 = vmatprep.subr.bf16.mxu0 0
    %393 = vmatpush1.bf16.xpose.msra.mxu0 0
    %394 = vmatprep.subr.bf16.mxu0 0
    %395 = vmatpush1.bf16.xpose.msra.mxu0 0
    %396 = vmatprep.subr.bf16.mxu0 0
    %397 = vmatpush1.bf16.xpose.msra.mxu0 0
    %398 = vmatprep.subr.bf16.mxu0 0
    %399 = vmatpush1.bf16.xpose.msra.mxu0 0
    %400 = vmatprep.subr.bf16.mxu0 0
    %401 = vmatpush1.bf16.xpose.msra.mxu0 0
    %402 = vmatprep.mubr.bf16.mxu0 0
    %403 = vmatmul.mubr.bf16.gmra.mrb[0].mxu0 %v365
    %v404 = vpop.f32.mrb[0].mxu0
    %v405 = vadd.f32 0.0, %v404
    %v406 = vpop.f32.mrb[0].mxu0
    %v407 = vpop.f32.mrb[0].mxu0
    %v408 = vadd.f32 0.0, %v407
    %v409 = vpop.f32.mrb[0].mxu0
    %410 = vdwg.mxu0
    %v411 = vmul.f32 %v405, 0.25
    %v412 = vmul.f32 %v408, 0.25
    %v413 = vadd.f32 %v411, %v289
    %v414 = vadd.f32 %v412, %v290
    %v415 = vsel %vm363, %v413, -inf
    %416 = vmax.xlane.f32.xlu0 %v415
    %v417 = vpop.xlane.xlu0 %416
    %v418 = vsel %vm363, %v414, -inf
    %419 = vmax.xlane.f32.xlu0 %v418
    %v420 = vpop.xlane.xlu0 %419
    %v421 = vsub.f32 %v413, %v417
    %v422 = vsub.f32 %v414, %v420
    %v423 = vmul.f32 %v421, 1.442695
    %v424 = vpow.pop %v423
    %v425 = vmul.f32 %v422, 1.442695
    %v426 = vpow.pop %v425
    %v427 = vsel %vm363, %v424, 0.0
    %428 = vadd.xlane.f32.xlu0 %v427
    %v429 = vpop.xlane.xlu0 %428
    %v430 = vsel %vm363, %v426, 0.0
    %431 = vadd.xlane.f32.xlu0 %v430
    %v432 = vpop.xlane.xlu0 %431
    %v433 = vrcp.pop %v429
    %v434 = vmul.f32 %v424, %v433
    %v435 = vrcp.pop %v432
    %v436 = vmul.f32 %v426, %v435
    %v437 = vpack.c.bf16 %v436, %v434
    %438 = vrot.lane.b32.xlu0 %v359, 64
    %v439 = vpop.permute.xlu0 %438
    %v442 = vsel %vm363, %v437, 0
    %444 = vmatprep.subr.bf16.mxu0 0
    %445 = vmatpush1.bf16.msra.mxu0 %v439
    %446 = vmatprep.subr.bf16.mxu0 0
    %447 = vmatpush1.bf16.msra.mxu0 0
    %448 = vmatprep.subr.bf16.mxu0 0
    %449 = vmatpush1.bf16.msra.mxu0 0
    %450 = vmatprep.subr.bf16.mxu0 0
    %451 = vmatpush1.bf16.msra.mxu0 0
    %452 = vmatprep.subr.bf16.mxu0 0
    %453 = vmatpush1.bf16.msra.mxu0 0
    %454 = vmatprep.subr.bf16.mxu0 0
    %455 = vmatpush1.bf16.msra.mxu0 0
    %456 = vmatprep.subr.bf16.mxu0 0
    %457 = vmatpush1.bf16.msra.mxu0 0
    %458 = vmatprep.subr.bf16.mxu0 0
    %459 = vmatpush1.bf16.msra.mxu0 0
    %460 = vmatprep.subr.bf16.mxu0 0
    %461 = vmatpush1.bf16.msra.mxu0 0
    %462 = vmatprep.subr.bf16.mxu0 0
    %463 = vmatpush1.bf16.msra.mxu0 0
    %464 = vmatprep.subr.bf16.mxu0 0
    %465 = vmatpush1.bf16.msra.mxu0 0
    %466 = vmatprep.subr.bf16.mxu0 0
    %467 = vmatpush1.bf16.msra.mxu0 0
    %468 = vmatprep.subr.bf16.mxu0 0
    %469 = vmatpush1.bf16.msra.mxu0 0
    %470 = vmatprep.subr.bf16.mxu0 0
    %471 = vmatpush1.bf16.msra.mxu0 0
    %472 = vmatprep.subr.bf16.mxu0 0
    %473 = vmatpush1.bf16.msra.mxu0 0
    %474 = vmatprep.subr.bf16.mxu0 0
    %475 = vmatpush1.bf16.msra.mxu0 0
    %476 = vmatprep.mubr.bf16.mxu0 0
    %477 = vmatmul.mubr.bf16.gmra.mrb[0].mxu0 %v442
    %v478 = vpop.f32.mrb[0].mxu0
    %v479 = vadd.f32 0.0, %v478
    %v480 = vpop.f32.mrb[0].mxu0
    %v481 = vpop.f32.mrb[0].mxu0
    %v482 = vadd.f32 0.0, %v481
    %v483 = vpop.f32.mrb[0].mxu0
    %484 = vdwg.mxu0
    %485 = vrot.lane.b32.xlu0 %v359, 112
    %v486 = vpop.permute.xlu0 %485
    %487 = vrot.lane.b32.xlu0 %v359, 80
    %v488 = vpop.permute.xlu0 %487
    %v490 = vsel %vm363, %v486, 0
    %v493 = vsel %vm363, %v488, 0
    %495 = vmatprep.subr.bf16.mxu0 0
    %496 = vmatpush1.bf16.xpose.msra.mxu0 %v493
    %497 = vmatprep.subr.bf16.mxu0 0
    %498 = vmatpush1.bf16.xpose.msra.mxu0 0
    %499 = vmatprep.subr.bf16.mxu0 0
    %500 = vmatpush1.bf16.xpose.msra.mxu0 0
    %501 = vmatprep.subr.bf16.mxu0 0
    %502 = vmatpush1.bf16.xpose.msra.mxu0 0
    %503 = vmatprep.subr.bf16.mxu0 0
    %504 = vmatpush1.bf16.xpose.msra.mxu0 0
    %505 = vmatprep.subr.bf16.mxu0 0
    %506 = vmatpush1.bf16.xpose.msra.mxu0 0
    %507 = vmatprep.subr.bf16.mxu0 0
    %508 = vmatpush1.bf16.xpose.msra.mxu0 0
    %509 = vmatprep.subr.bf16.mxu0 0
    %510 = vmatpush1.bf16.xpose.msra.mxu0 0
    %511 = vmatprep.subr.bf16.mxu0 0
    %512 = vmatpush1.bf16.xpose.msra.mxu0 0
    %513 = vmatprep.subr.bf16.mxu0 0
    %514 = vmatpush1.bf16.xpose.msra.mxu0 0
    %515 = vmatprep.subr.bf16.mxu0 0
    %516 = vmatpush1.bf16.xpose.msra.mxu0 0
    %517 = vmatprep.subr.bf16.mxu0 0
    %518 = vmatpush1.bf16.xpose.msra.mxu0 0
    %519 = vmatprep.subr.bf16.mxu0 0
    %520 = vmatpush1.bf16.xpose.msra.mxu0 0
    %521 = vmatprep.subr.bf16.mxu0 0
    %522 = vmatpush1.bf16.xpose.msra.mxu0 0
    %523 = vmatprep.subr.bf16.mxu0 0
    %524 = vmatpush1.bf16.xpose.msra.mxu0 0
    %525 = vmatprep.subr.bf16.mxu0 0
    %526 = vmatpush1.bf16.xpose.msra.mxu0 0
    %527 = vmatprep.mubr.bf16.mxu0 0
    %528 = vmatmul.mubr.bf16.gmra.mrb[0].mxu0 %v490
    %v529 = vpop.f32.mrb[0].mxu0
    %v530 = vadd.f32 0.0, %v529
    %v531 = vpop.f32.mrb[0].mxu0
    %v532 = vpop.f32.mrb[0].mxu0
    %v533 = vadd.f32 0.0, %v532
    %v534 = vpop.f32.mrb[0].mxu0
    %535 = vdwg.mxu0
    %v536 = vmul.f32 %v530, 0.25
    %v537 = vmul.f32 %v533, 0.25
    %v538 = vadd.f32 %v536, %v289
    %v539 = vadd.f32 %v537, %v290
    %v540 = vsel %vm363, %v538, -inf
    %541 = vmax.xlane.f32.xlu0 %v540
    %v542 = vpop.xlane.xlu0 %541
    %v543 = vsel %vm363, %v539, -inf
    %544 = vmax.xlane.f32.xlu0 %v543
    %v545 = vpop.xlane.xlu0 %544
    %v546 = vsub.f32 %v538, %v542
    %v547 = vsub.f32 %v539, %v545
    %v548 = vmul.f32 %v546, 1.442695
    %v549 = vpow.pop %v548
    %v550 = vmul.f32 %v547, 1.442695
    %v551 = vpow.pop %v550
    %v552 = vsel %vm363, %v549, 0.0
    %553 = vadd.xlane.f32.xlu0 %v552
    %v554 = vpop.xlane.xlu0 %553
    %v555 = vsel %vm363, %v551, 0.0
    %556 = vadd.xlane.f32.xlu0 %v555
    %v557 = vpop.xlane.xlu0 %556
    %v558 = vrcp.pop %v554
    %v559 = vmul.f32 %v549, %v558
    %v560 = vrcp.pop %v557
    %v561 = vmul.f32 %v551, %v560
    %v562 = vpack.c.bf16 %v561, %v559
    %563 = vrot.lane.b32.xlu0 %v359, 48
    %v564 = vpop.permute.xlu0 %563
    %v567 = vsel %vm363, %v562, 0
    %569 = vmatprep.subr.bf16.mxu0 0
    %570 = vmatpush1.bf16.msra.mxu0 %v564
    %571 = vmatprep.subr.bf16.mxu0 0
    %572 = vmatpush1.bf16.msra.mxu0 0
    %573 = vmatprep.subr.bf16.mxu0 0
    %574 = vmatpush1.bf16.msra.mxu0 0
    %575 = vmatprep.subr.bf16.mxu0 0
    %576 = vmatpush1.bf16.msra.mxu0 0
    %577 = vmatprep.subr.bf16.mxu0 0
    %578 = vmatpush1.bf16.msra.mxu0 0
    %579 = vmatprep.subr.bf16.mxu0 0
    %580 = vmatpush1.bf16.msra.mxu0 0
    %581 = vmatprep.subr.bf16.mxu0 0
    %582 = vmatpush1.bf16.msra.mxu0 0
    %583 = vmatprep.subr.bf16.mxu0 0
    %584 = vmatpush1.bf16.msra.mxu0 0
    %585 = vmatprep.subr.bf16.mxu0 0
    %586 = vmatpush1.bf16.msra.mxu0 0
    %587 = vmatprep.subr.bf16.mxu0 0
    %588 = vmatpush1.bf16.msra.mxu0 0
    %589 = vmatprep.subr.bf16.mxu0 0
    %590 = vmatpush1.bf16.msra.mxu0 0
    %591 = vmatprep.subr.bf16.mxu0 0
    %592 = vmatpush1.bf16.msra.mxu0 0
    %593 = vmatprep.subr.bf16.mxu0 0
    %594 = vmatpush1.bf16.msra.mxu0 0
    %595 = vmatprep.subr.bf16.mxu0 0
    %596 = vmatpush1.bf16.msra.mxu0 0
    %597 = vmatprep.subr.bf16.mxu0 0
    %598 = vmatpush1.bf16.msra.mxu0 0
    %599 = vmatprep.subr.bf16.mxu0 0
    %600 = vmatpush1.bf16.msra.mxu0 0
    %601 = vmatprep.mubr.bf16.mxu0 0
    %602 = vmatmul.mubr.bf16.gmra.mrb[0].mxu0 %v567
    %v603 = vpop.f32.mrb[0].mxu0
    %v604 = vadd.f32 0.0, %v603
    %v605 = vpop.f32.mrb[0].mxu0
    %v606 = vpop.f32.mrb[0].mxu0
    %v607 = vadd.f32 0.0, %v606
    %v608 = vpop.f32.mrb[0].mxu0
    %609 = vdwg.mxu0
    %612 = vrot.lane.b32.xlu0 %v604, 16
    %v613 = vpop.permute.xlu0 %612
    %614 = vrot.lane.b32.xlu0 %v607, 16
    %v615 = vpop.permute.xlu0 %614
    %v618 = vsel %vm363, %v479, %v613
    %v619 = vsel %vm363, %v482, %v615
    %v620 = vld [vmem:[%s6] sm:$0xf]
    %v621 = vld [vmem:[%s6 + $0x4] sm:$0xf]
    %v622 = vld [vmem:[%s6 + $0x8] sm:$0xf]
    %v623 = vld [vmem:[%s6 + $0xc] sm:$0xf]
    %v624 = vpack.c.bf16 %v619, %v618
    %v625 = vld [vmem:[#allocation11] sm:$0x1]
    %v627 = vlaneseq
    %v628 = vshrl.u32 %v627, 7
    %v629 = vsub.s32 0, %v628
    %v630 = vrot.slane %v625, %v629
    %v636 = vunpack.c.l.b16 %v620
    %v637 = vunpack.c.l.b16 %v621
    %v638 = vunpack.c.l.b16 %v622
    %v639 = vunpack.c.l.b16 %v623
    %v640 = vpack.c.b16 %v637, %v636
    %v641 = vpack.c.b16 %v639, %v638
    %v645 = vsel %vm245, %v624, 0
    %647 = vmatprep.subr.bf16.mxu0 0
    %648 = vmatpush1.bf16.msra.mxu0 %v640
    %649 = vmatprep.subr.bf16.mxu0 0
    %650 = vmatpush1.bf16.msra.mxu0 %v641
    %651 = vmatprep.subr.bf16.mxu0 0
    %652 = vmatpush1.bf16.msra.mxu0 0
    %653 = vmatprep.subr.bf16.mxu0 0
    %654 = vmatpush1.bf16.msra.mxu0 0
    %655 = vmatprep.subr.bf16.mxu0 0
    %656 = vmatpush1.bf16.msra.mxu0 0
    %657 = vmatprep.subr.bf16.mxu0 0
    %658 = vmatpush1.bf16.msra.mxu0 0
    %659 = vmatprep.subr.bf16.mxu0 0
    %660 = vmatpush1.bf16.msra.mxu0 0
    %661 = vmatprep.subr.bf16.mxu0 0
    %662 = vmatpush1.bf16.msra.mxu0 0
    %663 = vmatprep.subr.bf16.mxu0 0
    %664 = vmatpush1.bf16.msra.mxu0 0
    %665 = vmatprep.subr.bf16.mxu0 0
    %666 = vmatpush1.bf16.msra.mxu0 0
    %667 = vmatprep.subr.bf16.mxu0 0
    %668 = vmatpush1.bf16.msra.mxu0 0
    %669 = vmatprep.subr.bf16.mxu0 0
    %670 = vmatpush1.bf16.msra.mxu0 0
    %671 = vmatprep.subr.bf16.mxu0 0
    %672 = vmatpush1.bf16.msra.mxu0 0
    %673 = vmatprep.subr.bf16.mxu0 0
    %674 = vmatpush1.bf16.msra.mxu0 0
    %675 = vmatprep.subr.bf16.mxu0 0
    %676 = vmatpush1.bf16.msra.mxu0 0
    %677 = vmatprep.subr.bf16.mxu0 0
    %678 = vmatpush1.bf16.msra.mxu0 0
    %679 = vmatprep.mubr.bf16.mxu0 0
    %680 = vmatmul.mubr.bf16.gmra.mrb[0].mxu0 %v645
    %v681 = vpop.f32.mrb[0].mxu0
    %v682 = vadd.f32 %v630, %v681
    %v683 = vpop.f32.mrb[0].mxu0
    %v684 = vpop.f32.mrb[0].mxu0
    %v685 = vadd.f32 %v630, %v684
    %v686 = vpop.f32.mrb[0].mxu0
    %687 = vdwg.mxu0
    %v688 = vadd.f32 %v682, %v287
    %v689 = vadd.f32 %v685, %v288
    %v690 = vld [vmem:[#allocation13] sm:$0x1]
    %v691 = vld [vmem:[#allocation14] sm:$0x1]
    %v692 = vsel %vm245, %v688, 0.0
    %693 = vadd.xlane.f32.xlu0 %v692
    %v694 = vpop.xlane.xlu0 %693
    %v695 = vsel %vm245, %v689, 0.0
    %696 = vadd.xlane.f32.xlu0 %v695
    %v697 = vpop.xlane.xlu0 %696
    %v698 = vmul.f32 %v694, %v252
    %v699 = vmul.f32 %v697, %v252
    %v700 = vsub.f32 %v688, %v698
    %v701 = vsub.f32 %v689, %v699
    %v702 = vmul.f32 %v700, %v700
    %v703 = vmul.f32 %v701, %v701
    %v704 = vsel %vm245, %v702, 0.0
    %705 = vadd.xlane.f32.xlu0 %v704
    %v706 = vpop.xlane.xlu0 %705
    %v707 = vsel %vm245, %v703, 0.0
    %708 = vadd.xlane.f32.xlu0 %v707
    %v709 = vpop.xlane.xlu0 %708
    %v710 = vmul.f32 %v706, %v252
    %v711 = vmul.f32 %v709, %v252
    %v712 = vadd.f32 %v710, 1e-12
    %v713 = vadd.f32 %v711, 1e-12
    %v714 = vrsqrt.pop %v712
    %v715 = vrsqrt.pop %v713
    %v716 = vmul.f32 %v700, %v714
    %v717 = vmul.f32 %v701, %v715
    %v719 = vlaneseq
    %v720 = vshrl.u32 %v719, 7
    %v721 = vsub.s32 0, %v720
    %v722 = vrot.slane %v690, %v721
    %v724 = vmul.f32 %v716, %v722
    %v725 = vmul.f32 %v717, %v722
    %v727 = vlaneseq
    %v728 = vshrl.u32 %v727, 7
    %v729 = vsub.s32 0, %v728
    %v730 = vrot.slane %v691, %v729
    %v732 = vadd.f32 %v724, %v730
    %v733 = vadd.f32 %v725, %v730
    %v734 = vld [vmem:[%s10] sm:$0xf]
    %v735 = vld [vmem:[%s10 + $0x4] sm:$0xf]
    %v736 = vld [vmem:[%s10 + $0x8] sm:$0xf]
    %v737 = vld [vmem:[%s10 + $0xc] sm:$0xf]
    %v738 = vpack.c.bf16 %v733, %v732
    %v739 = vld [vmem:[#allocation16] sm:$0x1]
    %v741 = vlaneseq
    %v742 = vshrl.u32 %v741, 7
    %v743 = vsub.s32 0, %v742
    %v744 = vrot.slane %v739, %v743
    %v750 = vunpack.c.l.b16 %v734
    %v751 = vunpack.c.l.b16 %v735
    %v752 = vunpack.c.l.b16 %v736
    %v753 = vunpack.c.l.b16 %v737
    %v754 = vpack.c.b16 %v751, %v750
    %v755 = vpack.c.b16 %v753, %v752
    %v759 = vsel %vm245, %v738, 0
    %761 = vmatprep.subr.bf16.mxu0 0
    %762 = vmatpush1.bf16.msra.mxu0 %v754
    %763 = vmatprep.subr.bf16.mxu0 0
    %764 = vmatpush1.bf16.msra.mxu0 %v755
    %765 = vmatprep.subr.bf16.mxu0 0
    %766 = vmatpush1.bf16.msra.mxu0 0
    %767 = vmatprep.subr.bf16.mxu0 0
    %768 = vmatpush1.bf16.msra.mxu0 0
    %769 = vmatprep.subr.bf16.mxu0 0
    %770 = vmatpush1.bf16.msra.mxu0 0
    %771 = vmatprep.subr.bf16.mxu0 0
    %772 = vmatpush1.bf16.msra.mxu0 0
    %773 = vmatprep.subr.bf16.mxu0 0
    %774 = vmatpush1.bf16.msra.mxu0 0
    %775 = vmatprep.subr.bf16.mxu0 0
    %776 = vmatpush1.bf16.msra.mxu0 0
    %777 = vmatprep.subr.bf16.mxu0 0
    %778 = vmatpush1.bf16.msra.mxu0 0
    %779 = vmatprep.subr.bf16.mxu0 0
    %780 = vmatpush1.bf16.msra.mxu0 0
    %781 = vmatprep.subr.bf16.mxu0 0
    %782 = vmatpush1.bf16.msra.mxu0 0
    %783 = vmatprep.subr.bf16.mxu0 0
    %784 = vmatpush1.bf16.msra.mxu0 0
    %785 = vmatprep.subr.bf16.mxu0 0
    %786 = vmatpush1.bf16.msra.mxu0 0
    %787 = vmatprep.subr.bf16.mxu0 0
    %788 = vmatpush1.bf16.msra.mxu0 0
    %789 = vmatprep.subr.bf16.mxu0 0
    %790 = vmatpush1.bf16.msra.mxu0 0
    %791 = vmatprep.subr.bf16.mxu0 0
    %792 = vmatpush1.bf16.msra.mxu0 0
    %793 = vmatprep.mubr.bf16.mxu0 0
    %794 = vmatmul.mubr.bf16.gmra.mrb[0].mxu0 %v759
    %v795 = vpop.f32.mrb[0].mxu0
    %v796 = vadd.f32 %v744, %v795
    %v797 = vpop.f32.mrb[0].mxu0
    %v798 = vpop.f32.mrb[0].mxu0
    %v799 = vadd.f32 %v744, %v798
    %v800 = vpop.f32.mrb[0].mxu0
    %801 = vdwg.mxu0
    %v802 = vmul.f32 %v796, 0.5
    %v803 = vmul.f32 %v799, 0.5
    %v804 = vmul.f32 %v796, 0.044715
    %v805 = vmul.f32 %v799, 0.044715
    %v806 = vmul.f32 %v804, %v796
    %v807 = vmul.f32 %v805, %v799
    %v808 = vmul.f32 %v806, %v796
    %v809 = vmul.f32 %v807, %v799
    %v810 = vadd.f32 %v796, %v808
    %v811 = vadd.f32 %v799, %v809
    %v812 = vmul.f32 %v810, 0.7978846
    %v813 = vmul.f32 %v811, 0.7978846
    %v814 = vtanh.pop %v812
    %v815 = vtanh.pop %v813
    %v816 = vadd.f32 %v814, 1.0
    %v817 = vadd.f32 %v815, 1.0
    %v818 = vmul.f32 %v802, %v816
    %v819 = vmul.f32 %v803, %v817
    %v820 = vld [vmem:[%s12] sm:$0xf]
    %v821 = vld [vmem:[%s12 + $0x4] sm:$0xf]
    %v822 = vld [vmem:[%s12 + $0x8] sm:$0xf]
    %v823 = vld [vmem:[%s12 + $0xc] sm:$0xf]
    %v824 = vld [vmem:[%s12 + $0x10] sm:$0xf]
    %v825 = vld [vmem:[%s12 + $0x14] sm:$0xf]
    %v826 = vld [vmem:[%s12 + $0x18] sm:$0xf]
    %v827 = vld [vmem:[%s12 + $0x1c] sm:$0xf]
    %v828 = vpack.c.bf16 %v819, %v818
    %v829 = vld [vmem:[#allocation17] sm:$0x1]
    %v831 = vlaneseq
    %v832 = vshrl.u32 %v831, 7
    %v833 = vsub.s32 0, %v832
    %v834 = vrot.slane %v829, %v833
    %v844 = vunpack.c.l.b16 %v820
    %v845 = vunpack.c.l.b16 %v821
    %v846 = vunpack.c.l.b16 %v822
    %v847 = vunpack.c.l.b16 %v823
    %v848 = vunpack.c.l.b16 %v824
    %v849 = vunpack.c.l.b16 %v825
    %v850 = vunpack.c.l.b16 %v826
    %v851 = vunpack.c.l.b16 %v827
    %v852 = vpack.c.b16 %v845, %v844
    %v853 = vpack.c.b16 %v847, %v846
    %v854 = vpack.c.b16 %v849, %v848
    %v855 = vpack.c.b16 %v851, %v850
    %vm860 = vcmask 523264
    %v862 = vsel %vm860, %v828, 0
    %864 = vmatprep.subr.bf16.mxu0 0
    %865 = vmatpush1.bf16.msra.mxu0 %v852
    %866 = vmatprep.subr.bf16.mxu0 0
    %867 = vmatpush1.bf16.msra.mxu0 %v853
    %868 = vmatprep.subr.bf16.mxu0 0
    %869 = vmatpush1.bf16.msra.mxu0 %v854
    %870 = vmatprep.subr.bf16.mxu0 0
    %871 = vmatpush1.bf16.msra.mxu0 %v855
    %872 = vmatprep.subr.bf16.mxu0 0
    %873 = vmatpush1.bf16.msra.mxu0 0
    %874 = vmatprep.subr.bf16.mxu0 0
    %875 = vmatpush1.bf16.msra.mxu0 0
    %876 = vmatprep.subr.bf16.mxu0 0
    %877 = vmatpush1.bf16.msra.mxu0 0
    %878 = vmatprep.subr.bf16.mxu0 0
    %879 = vmatpush1.bf16.msra.mxu0 0
    %880 = vmatprep.subr.bf16.mxu0 0
    %881 = vmatpush1.bf16.msra.mxu0 0
    %882 = vmatprep.subr.bf16.mxu0 0
    %883 = vmatpush1.bf16.msra.mxu0 0
    %884 = vmatprep.subr.bf16.mxu0 0
    %885 = vmatpush1.bf16.msra.mxu0 0
    %886 = vmatprep.subr.bf16.mxu0 0
    %887 = vmatpush1.bf16.msra.mxu0 0
    %888 = vmatprep.subr.bf16.mxu0 0
    %889 = vmatpush1.bf16.msra.mxu0 0
    %890 = vmatprep.subr.bf16.mxu0 0
    %891 = vmatpush1.bf16.msra.mxu0 0
    %892 = vmatprep.subr.bf16.mxu0 0
    %893 = vmatpush1.bf16.msra.mxu0 0
    %894 = vmatprep.subr.bf16.mxu0 0
    %895 = vmatpush1.bf16.msra.mxu0 0
    %896 = vmatprep.mubr.bf16.mxu0 0
    %897 = vmatmul.mubr.bf16.gmra.mrb[0].mxu0 %v862
    %v898 = vpop.f32.mrb[0].mxu0
    %v899 = vadd.f32 %v834, %v898
    %v900 = vpop.f32.mrb[0].mxu0
    %v901 = vpop.f32.mrb[0].mxu0
    %v902 = vadd.f32 %v834, %v901
    %v903 = vpop.f32.mrb[0].mxu0
    %904 = vdwg.mxu0
    %v905 = vadd.f32 %v899, %v732
    %v906 = vadd.f32 %v902, %v733
    %v907 = vld [vmem:[#allocation19] sm:$0x1]
    %v908 = vld [vmem:[#allocation20] sm:$0x1]
    %v909 = vsel %vm245, %v905, 0.0
    %910 = vadd.xlane.f32.xlu0 %v909
    %v911 = vpop.xlane.xlu0 %910
    %v912 = vsel %vm245, %v906, 0.0
    %913 = vadd.xlane.f32.xlu0 %v912
    %v914 = vpop.xlane.xlu0 %913
    %v915 = vmul.f32 %v911, %v252
    %v916 = vmul.f32 %v914, %v252
    %v917 = vsub.f32 %v905, %v915
    %v918 = vsub.f32 %v906, %v916
    %v919 = vmul.f32 %v917, %v917
    %v920 = vmul.f32 %v918, %v918
    %v921 = vsel %vm245, %v919, 0.0
    %922 = vadd.xlane.f32.xlu0 %v921
    %v923 = vpop.xlane.xlu0 %922
    %v924 = vsel %vm245, %v920, 0.0
    %925 = vadd.xlane.f32.xlu0 %v924
    %v926 = vpop.xlane.xlu0 %925
    %v927 = vmul.f32 %v923, %v252
    %v928 = vmul.f32 %v926, %v252
    %v929 = vadd.f32 %v927, 1e-12
    %v930 = vadd.f32 %v928, 1e-12
    %v931 = vrsqrt.pop %v929
    %v932 = vrsqrt.pop %v930
    %v933 = vmul.f32 %v917, %v931
    %v934 = vmul.f32 %v918, %v932
    %v936 = vlaneseq
    %v937 = vshrl.u32 %v936, 7
    %v938 = vsub.s32 0, %v937
    %v939 = vrot.slane %v907, %v938
    %v941 = vmul.f32 %v933, %v939
    %v942 = vmul.f32 %v934, %v939
    %v944 = vlaneseq
    %v945 = vshrl.u32 %v944, 7
    %v946 = vsub.s32 0, %v945
    %v947 = vrot.slane %v908, %v946
    %v949 = vadd.f32 %v941, %v947
    %v950 = vadd.f32 %v942, %v947
    %s951 = scalar_lea.vmem %s4, 16
    %v952 = vld [vmem:[%s951] sm:$0xf]
    %v953 = vld [vmem:[%s951 + $0x4] sm:$0xf]
    %v954 = vld [vmem:[%s951 + $0x8] sm:$0xf]
    %v955 = vld [vmem:[%s951 + $0xc] sm:$0xf]
    %v956 = vpack.c.bf16 %v950, %v949
    %s957 = scalar_lea.vmem [#allocation10], 1
    %v958 = vld [vmem:[%s957] sm:$0x1]
    %v960 = vlaneseq
    %v961 = vshrl.u32 %v960, 7
    %v962 = vsub.s32 0, %v961
    %v963 = vrot.slane %v958, %v962
    %v969 = vunpack.c.l.b16 %v952
    %v970 = vunpack.c.l.b16 %v953
    %v971 = vunpack.c.l.b16 %v954
    %v972 = vunpack.c.l.b16 %v955
    %v973 = vpack.c.b16 %v970, %v969
    %v974 = vpack.c.b16 %v972, %v971
    %v978 = vsel %vm245, %v956, 0
    %980 = vmatprep.subr.bf16.mxu0 0
    %981 = vmatpush1.bf16.msra.mxu0 %v973
    %982 = vmatprep.subr.bf16.mxu0 0
    %983 = vmatpush1.bf16.msra.mxu0 %v974
    %984 = vmatprep.subr.bf16.mxu0 0
    %985 = vmatpush1.bf16.msra.mxu0 0
    %986 = vmatprep.subr.bf16.mxu0 0
    %987 = vmatpush1.bf16.msra.mxu0 0
    %988 = vmatprep.subr.bf16.mxu0 0
    %989 = vmatpush1.bf16.msra.mxu0 0
    %990 = vmatprep.subr.bf16.mxu0 0
    %991 = vmatpush1.bf16.msra.mxu0 0
    %992 = vmatprep.subr.bf16.mxu0 0
    %993 = vmatpush1.bf16.msra.mxu0 0
    %994 = vmatprep.subr.bf16.mxu0 0
    %995 = vmatpush1.bf16.msra.mxu0 0
    %996 = vmatprep.subr.bf16.mxu0 0
    %997 = vmatpush1.bf16.msra.mxu0 0
    %998 = vmatprep.subr.bf16.mxu0 0
    %999 = vmatpush1.bf16.msra.mxu0 0
    %1000 = vmatprep.subr.bf16.mxu0 0
    %1001 = vmatpush1.bf16.msra.mxu0 0
    %1002 = vmatprep.subr.bf16.mxu0 0
    %1003 = vmatpush1.bf16.msra.mxu0 0
    %1004 = vmatprep.subr.bf16.mxu0 0
    %1005 = vmatpush1.bf16.msra.mxu0 0
    %1006 = vmatprep.subr.bf16.mxu0 0
    %1007 = vmatpush1.bf16.msra.mxu0 0
    %1008 = vmatprep.subr.bf16.mxu0 0
    %1009 = vmatpush1.bf16.msra.mxu0 0
    %1010 = vmatprep.subr.bf16.mxu0 0
    %1011 = vmatpush1.bf16.msra.mxu0 0
    %1012 = vmatprep.mubr.bf16.mxu0 0
    %1013 = vmatmul.mubr.bf16.gmra.mrb[0].mxu0 %v978
    %v1014 = vpop.f32.mrb[0].mxu0
    %v1015 = vadd.f32 %v963, %v1014
    %v1016 = vpop.f32.mrb[0].mxu0
    %v1017 = vpop.f32.mrb[0].mxu0
    %v1018 = vadd.f32 %v963, %v1017
    %v1019 = vpop.f32.mrb[0].mxu0
    %1020 = vdwg.mxu0
    %v1021 = vpack.c.bf16 %v1018, %v1015
    %1023 = vrot.lane.b32.xlu0 %v1021, 96
    %v1024 = vpop.permute.xlu0 %1023
    %v1026 = vsel %vm363, %v1021, 0
    %v1029 = vsel %vm363, %v1024, 0
    %1031 = vmatprep.subr.bf16.mxu0 0
    %1032 = vmatpush1.bf16.xpose.msra.mxu0 %v1029
    %1033 = vmatprep.subr.bf16.mxu0 0
    %1034 = vmatpush1.bf16.xpose.msra.mxu0 0
    %1035 = vmatprep.subr.bf16.mxu0 0
    %1036 = vmatpush1.bf16.xpose.msra.mxu0 0
    %1037 = vmatprep.subr.bf16.mxu0 0
    %1038 = vmatpush1.bf16.xpose.msra.mxu0 0
    %1039 = vmatprep.subr.bf16.mxu0 0
    %1040 = vmatpush1.bf16.xpose.msra.mxu0 0
    %1041 = vmatprep.subr.bf16.mxu0 0
    %1042 = vmatpush1.bf16.xpose.msra.mxu0 0
    %1043 = vmatprep.subr.bf16.mxu0 0
    %1044 = vmatpush1.bf16.xpose.msra.mxu0 0
    %1045 = vmatprep.subr.bf16.mxu0 0
    %1046 = vmatpush1.bf16.xpose.msra.mxu0 0
    %1047 = vmatprep.subr.bf16.mxu0 0
    %1048 = vmatpush1.bf16.xpose.msra.mxu0 0
    %1049 = vmatprep.subr.bf16.mxu0 0
    %1050 = vmatpush1.bf16.xpose.msra.mxu0 0
    %1051 = vmatprep.subr.bf16.mxu0 0
    %1052 = vmatpush1.bf16.xpose.msra.mxu0 0
    %1053 = vmatprep.subr.bf16.mxu0 0
    %1054 = vmatpush1.bf16.xpose.msra.mxu0 0
    %1055 = vmatprep.subr.bf16.mxu0 0
    %1056 = vmatpush1.bf16.xpose.msra.mxu0 0
    %1057 = vmatprep.subr.bf16.mxu0 0
    %1058 = vmatpush1.bf16.xpose.msra.mxu0 0
    %1059 = vmatprep.subr.bf16.mxu0 0
    %1060 = vmatpush1.bf16.xpose.msra.mxu0 0
    %1061 = vmatprep.subr.bf16.mxu0 0
    %1062 = vmatpush1.bf16.xpose.msra.mxu0 0
    %1063 = vmatprep.mubr.bf16.mxu0 0
    %1064 = vmatmul.mubr.bf16.gmra.mrb[0].mxu0 %v1026
    %v1065 = vpop.f32.mrb[0].mxu0
    %v1066 = vadd.f32 0.0, %v1065
    %v1067 = vpop.f32.mrb[0].mxu0
    %v1068 = vpop.f32.mrb[0].mxu0
    %v1069 = vadd.f32 0.0, %v1068
    %v1070 = vpop.f32.mrb[0].mxu0
    %1071 = vdwg.mxu0
    %v1072 = vmul.f32 %v1066, 0.25
    %v1073 = vmul.f32 %v1069, 0.25
    %v1074 = vadd.f32 %v1072, %v289
    %v1075 = vadd.f32 %v1073, %v290
    %v1076 = vsel %vm363, %v1074, -inf
    %1077 = vmax.xlane.f32.xlu0 %v1076
    %v1078 = vpop.xlane.xlu0 %1077
    %v1079 = vsel %vm363, %v1075, -inf
    %1080 = vmax.xlane.f32.xlu0 %v1079
    %v1081 = vpop.xlane.xlu0 %1080
    %v1082 = vsub.f32 %v1074, %v1078
    %v1083 = vsub.f32 %v1075, %v1081
    %v1084 = vmul.f32 %v1082, 1.442695
    %v1085 = vpow.pop %v1084
    %v1086 = vmul.f32 %v1083, 1.442695
    %v1087 = vpow.pop %v1086
    %v1088 = vsel %vm363, %v1085, 0.0
    %1089 = vadd.xlane.f32.xlu0 %v1088
    %v1090 = vpop.xlane.xlu0 %1089
    %v1091 = vsel %vm363, %v1087, 0.0
    %1092 = vadd.xlane.f32.xlu0 %v1091
    %v1093 = vpop.xlane.xlu0 %1092
    %v1094 = vrcp.pop %v1090
    %v1095 = vmul.f32 %v1085, %v1094
    %v1096 = vrcp.pop %v1093
    %v1097 = vmul.f32 %v1087, %v1096
    %v1098 = vpack.c.bf16 %v1097, %v1095
    %1099 = vrot.lane.b32.xlu0 %v1021, 64
    %v1100 = vpop.permute.xlu0 %1099
    %v1103 = vsel %vm363, %v1098, 0
    %1105 = vmatprep.subr.bf16.mxu0 0
    %1106 = vmatpush1.bf16.msra.mxu0 %v1100
    %1107 = vmatprep.subr.bf16.mxu0 0
    %1108 = vmatpush1.bf16.msra.mxu0 0
    %1109 = vmatprep.subr.bf16.mxu0 0
    %1110 = vmatpush1.bf16.msra.mxu0 0
    %1111 = vmatprep.subr.bf16.mxu0 0
    %1112 = vmatpush1.bf16.msra.mxu0 0
    %1113 = vmatprep.subr.bf16.mxu0 0
    %1114 = vmatpush1.bf16.msra.mxu0 0
    %1115 = vmatprep.subr.bf16.mxu0 0
    %1116 = vmatpush1.bf16.msra.mxu0 0
    %1117 = vmatprep.subr.bf16.mxu0 0
    %1118 = vmatpush1.bf16.msra.mxu0 0
    %1119 = vmatprep.subr.bf16.mxu0 0
    %1120 = vmatpush1.bf16.msra.mxu0 0
    %1121 = vmatprep.subr.bf16.mxu0 0
    %1122 = vmatpush1.bf16.msra.mxu0 0
    %1123 = vmatprep.subr.bf16.mxu0 0
    %1124 = vmatpush1.bf16.msra.mxu0 0
    %1125 = vmatprep.subr.bf16.mxu0 0
    %1126 = vmatpush1.bf16.msra.mxu0 0
    %1127 = vmatprep.subr.bf16.mxu0 0
    %1128 = vmatpush1.bf16.msra.mxu0 0
    %1129 = vmatprep.subr.bf16.mxu0 0
    %1130 = vmatpush1.bf16.msra.mxu0 0
    %1131 = vmatprep.subr.bf16.mxu0 0
    %1132 = vmatpush1.bf16.msra.mxu0 0
    %1133 = vmatprep.subr.bf16.mxu0 0
    %1134 = vmatpush1.bf16.msra.mxu0 0
    %1135 = vmatprep.subr.bf16.mxu0 0
    %1136 = vmatpush1.bf16.msra.mxu0 0
    %1137 = vmatprep.mubr.bf16.mxu0 0
    %1138 = vmatmul.mubr.bf16.gmra.mrb[0].mxu0 %v1103
    %v1139 = vpop.f32.mrb[0].mxu0
    %v1140 = vadd.f32 0.0, %v1139
    %v1141 = vpop.f32.mrb[0].mxu0
    %v1142 = vpop.f32.mrb[0].mxu0
    %v1143 = vadd.f32 0.0, %v1142
    %v1144 = vpop.f32.mrb[0].mxu0
    %1145 = vdwg.mxu0
    %1146 = vrot.lane.b32.xlu0 %v1021, 112
    %v1147 = vpop.permute.xlu0 %1146
    %1148 = vrot.lane.b32.xlu0 %v1021, 80
    %v1149 = vpop.permute.xlu0 %1148
    %v1151 = vsel %vm363, %v1147, 0
    %v1154 = vsel %vm363, %v1149, 0
    %1156 = vmatprep.subr.bf16.mxu0 0
    %1157 = vmatpush1.bf16.xpose.msra.mxu0 %v1154
    %1158 = vmatprep.subr.bf16.mxu0 0
    %1159 = vmatpush1.bf16.xpose.msra.mxu0 0
    %1160 = vmatprep.subr.bf16.mxu0 0
    %1161 = vmatpush1.bf16.xpose.msra.mxu0 0
    %1162 = vmatprep.subr.bf16.mxu0 0
    %1163 = vmatpush1.bf16.xpose.msra.mxu0 0
    %1164 = vmatprep.subr.bf16.mxu0 0
    %1165 = vmatpush1.bf16.xpose.msra.mxu0 0
    %1166 = vmatprep.subr.bf16.mxu0 0
    %1167 = vmatpush1.bf16.xpose.msra.mxu0 0
    %1168 = vmatprep.subr.bf16.mxu0 0
    %1169 = vmatpush1.bf16.xpose.msra.mxu0 0
    %1170 = vmatprep.subr.bf16.mxu0 0
    %1171 = vmatpush1.bf16.xpose.msra.mxu0 0
    %1172 = vmatprep.subr.bf16.mxu0 0
    %1173 = vmatpush1.bf16.xpose.msra.mxu0 0
    %1174 = vmatprep.subr.bf16.mxu0 0
    %1175 = vmatpush1.bf16.xpose.msra.mxu0 0
    %1176 = vmatprep.subr.bf16.mxu0 0
    %1177 = vmatpush1.bf16.xpose.msra.mxu0 0
    %1178 = vmatprep.subr.bf16.mxu0 0
    %1179 = vmatpush1.bf16.xpose.msra.mxu0 0
    %1180 = vmatprep.subr.bf16.mxu0 0
    %1181 = vmatpush1.bf16.xpose.msra.mxu0 0
    %1182 = vmatprep.subr.bf16.mxu0 0
    %1183 = vmatpush1.bf16.xpose.msra.mxu0 0
    %1184 = vmatprep.subr.bf16.mxu0 0
    %1185 = vmatpush1.bf16.xpose.msra.mxu0 0
    %1186 = vmatprep.subr.bf16.mxu0 0
    %1187 = vmatpush1.bf16.xpose.msra.mxu0 0
    %1188 = vmatprep.mubr.bf16.mxu0 0
    %1189 = vmatmul.mubr.bf16.gmra.mrb[0].mxu0 %v1151
    %v1190 = vpop.f32.mrb[0].mxu0
    %v1191 = vadd.f32 0.0, %v1190
    %v1192 = vpop.f32.mrb[0].mxu0
    %v1193 = vpop.f32.mrb[0].mxu0
    %v1194 = vadd.f32 0.0, %v1193
    %v1195 = vpop.f32.mrb[0].mxu0
    %1196 = vdwg.mxu0
    %v1197 = vmul.f32 %v1191, 0.25
    %v1198 = vmul.f32 %v1194, 0.25
    %v1199 = vadd.f32 %v1197, %v289
    %v1200 = vadd.f32 %v1198, %v290
    %v1201 = vsel %vm363, %v1199, -inf
    %1202 = vmax.xlane.f32.xlu0 %v1201
    %v1203 = vpop.xlane.xlu0 %1202
    %v1204 = vsel %vm363, %v1200, -inf
    %1205 = vmax.xlane.f32.xlu0 %v1204
    %v1206 = vpop.xlane.xlu0 %1205
    %v1207 = vsub.f32 %v1199, %v1203
    %v1208 = vsub.f32 %v1200, %v1206
    %v1209 = vmul.f32 %v1207, 1.442695
    %v1210 = vpow.pop %v1209
    %v1211 = vmul.f32 %v1208, 1.442695
    %v1212 = vpow.pop %v1211
    %v1213 = vsel %vm363, %v1210, 0.0
    %1214 = vadd.xlane.f32.xlu0 %v1213
    %v1215 = vpop.xlane.xlu0 %1214
    %v1216 = vsel %vm363, %v1212, 0.0
    %1217 = vadd.xlane.f32.xlu0 %v1216
    %v1218 = vpop.xlane.xlu0 %1217
    %v1219 = vrcp.pop %v1215
    %v1220 = vmul.f32 %v1210, %v1219
    %v1221 = vrcp.pop %v1218
    %v1222 = vmul.f32 %v1212, %v1221
    %v1223 = vpack.c.bf16 %v1222, %v1220
    %1224 = vrot.lane.b32.xlu0 %v1021, 48
    %v1225 = vpop.permute.xlu0 %1224
    %v1228 = vsel %vm363, %v1223, 0
    %1230 = vmatprep.subr.bf16.mxu0 0
    %1231 = vmatpush1.bf16.msra.mxu0 %v1225
    %1232 = vmatprep.subr.bf16.mxu0 0
    %1233 = vmatpush1.bf16.msra.mxu0 0
    %1234 = vmatprep.subr.bf16.mxu0 0
    %1235 = vmatpush1.bf16.msra.mxu0 0
    %1236 = vmatprep.subr.bf16.mxu0 0
    %1237 = vmatpush1.bf16.msra.mxu0 0
    %1238 = vmatprep.subr.bf16.mxu0 0
    %1239 = vmatpush1.bf16.msra.mxu0 0
    %1240 = vmatprep.subr.bf16.mxu0 0
    %1241 = vmatpush1.bf16.msra.mxu0 0
    %1242 = vmatprep.subr.bf16.mxu0 0
    %1243 = vmatpush1.bf16.msra.mxu0 0
    %1244 = vmatprep.subr.bf16.mxu0 0
    %1245 = vmatpush1.bf16.msra.mxu0 0
    %1246 = vmatprep.subr.bf16.mxu0 0
    %1247 = vmatpush1.bf16.msra.mxu0 0
    %1248 = vmatprep.subr.bf16.mxu0 0
    %1249 = vmatpush1.bf16.msra.mxu0 0
    %1250 = vmatprep.subr.bf16.mxu0 0
    %1251 = vmatpush1.bf16.msra.mxu0 0
    %1252 = vmatprep.subr.bf16.mxu0 0
    %1253 = vmatpush1.bf16.msra.mxu0 0
    %1254 = vmatprep.subr.bf16.mxu0 0
    %1255 = vmatpush1.bf16.msra.mxu0 0
    %1256 = vmatprep.subr.bf16.mxu0 0
    %1257 = vmatpush1.bf16.msra.mxu0 0
    %1258 = vmatprep.subr.bf16.mxu0 0
    %1259 = vmatpush1.bf16.msra.mxu0 0
    %1260 = vmatprep.subr.bf16.mxu0 0
    %1261 = vmatpush1.bf16.msra.mxu0 0
    %1262 = vmatprep.mubr.bf16.mxu0 0
    %1263 = vmatmul.mubr.bf16.gmra.mrb[0].mxu0 %v1228
    %v1264 = vpop.f32.mrb[0].mxu0
    %v1265 = vadd.f32 0.0, %v1264
    %v1266 = vpop.f32.mrb[0].mxu0
    %v1267 = vpop.f32.mrb[0].mxu0
    %v1268 = vadd.f32 0.0, %v1267
    %v1269 = vpop.f32.mrb[0].mxu0
    %1270 = vdwg.mxu0
    %1273 = vrot.lane.b32.xlu0 %v1265, 16
    %v1274 = vpop.permute.xlu0 %1273
    %1275 = vrot.lane.b32.xlu0 %v1268, 16
    %v1276 = vpop.permute.xlu0 %1275
    %v1279 = vsel %vm363, %v1140, %v1274
    %v1280 = vsel %vm363, %v1143, %v1276
    %s1281 = scalar_lea.vmem %s6, 16
    %v1282 = vld [vmem:[%s1281] sm:$0xf]
    %v1283 = vld [vmem:[%s1281 + $0x4] sm:$0xf]
    %v1284 = vld [vmem:[%s1281 + $0x8] sm:$0xf]
    %v1285 = vld [vmem:[%s1281 + $0xc] sm:$0xf]
    %v1286 = vpack.c.bf16 %v1280, %v1279
    %s1287 = scalar_lea.vmem [#allocation11], 1
    %v1288 = vld [vmem:[%s1287] sm:$0x1]
    %v1290 = vlaneseq
    %v1291 = vshrl.u32 %v1290, 7
    %v1292 = vsub.s32 0, %v1291
    %v1293 = vrot.slane %v1288, %v1292
    %v1299 = vunpack.c.l.b16 %v1282
    %v1300 = vunpack.c.l.b16 %v1283
    %v1301 = vunpack.c.l.b16 %v1284
    %v1302 = vunpack.c.l.b16 %v1285
    %v1303 = vpack.c.b16 %v1300, %v1299
    %v1304 = vpack.c.b16 %v1302, %v1301
    %v1308 = vsel %vm245, %v1286, 0
    %1310 = vmatprep.subr.bf16.mxu0 0
    %1311 = vmatpush1.bf16.msra.mxu0 %v1303
    %1312 = vmatprep.subr.bf16.mxu0 0
    %1313 = vmatpush1.bf16.msra.mxu0 %v1304
    %1314 = vmatprep.subr.bf16.mxu0 0
    %1315 = vmatpush1.bf16.msra.mxu0 0
    %1316 = vmatprep.subr.bf16.mxu0 0
    %1317 = vmatpush1.bf16.msra.mxu0 0
    %1318 = vmatprep.subr.bf16.mxu0 0
    %1319 = vmatpush1.bf16.msra.mxu0 0
    %1320 = vmatprep.subr.bf16.mxu0 0
    %1321 = vmatpush1.bf16.msra.mxu0 0
    %1322 = vmatprep.subr.bf16.mxu0 0
    %1323 = vmatpush1.bf16.msra.mxu0 0
    %1324 = vmatprep.subr.bf16.mxu0 0
    %1325 = vmatpush1.bf16.msra.mxu0 0
    %1326 = vmatprep.subr.bf16.mxu0 0
    %1327 = vmatpush1.bf16.msra.mxu0 0
    %1328 = vmatprep.subr.bf16.mxu0 0
    %1329 = vmatpush1.bf16.msra.mxu0 0
    %1330 = vmatprep.subr.bf16.mxu0 0
    %1331 = vmatpush1.bf16.msra.mxu0 0
    %1332 = vmatprep.subr.bf16.mxu0 0
    %1333 = vmatpush1.bf16.msra.mxu0 0
    %1334 = vmatprep.subr.bf16.mxu0 0
    %1335 = vmatpush1.bf16.msra.mxu0 0
    %1336 = vmatprep.subr.bf16.mxu0 0
    %1337 = vmatpush1.bf16.msra.mxu0 0
    %1338 = vmatprep.subr.bf16.mxu0 0
    %1339 = vmatpush1.bf16.msra.mxu0 0
    %1340 = vmatprep.subr.bf16.mxu0 0
    %1341 = vmatpush1.bf16.msra.mxu0 0
    %1342 = vmatprep.mubr.bf16.mxu0 0
    %1343 = vmatmul.mubr.bf16.gmra.mrb[0].mxu0 %v1308
    %v1344 = vpop.f32.mrb[0].mxu0
    %v1345 = vadd.f32 %v1293, %v1344
    %v1346 = vpop.f32.mrb[0].mxu0
    %v1347 = vpop.f32.mrb[0].mxu0
    %v1348 = vadd.f32 %v1293, %v1347
    %v1349 = vpop.f32.mrb[0].mxu0
    %1350 = vdwg.mxu0
    %v1351 = vadd.f32 %v1345, %v949
    %v1352 = vadd.f32 %v1348, %v950
    %s1353 = scalar_lea.vmem [#allocation13], 1
    %v1354 = vld [vmem:[%s1353] sm:$0x1]
    %s1355 = scalar_lea.vmem [#allocation14], 1
    %v1356 = vld [vmem:[%s1355] sm:$0x1]
    %v1357 = vsel %vm245, %v1351, 0.0
    %1358 = vadd.xlane.f32.xlu0 %v1357
    %v1359 = vpop.xlane.xlu0 %1358
    %v1360 = vsel %vm245, %v1352, 0.0
    %1361 = vadd.xlane.f32.xlu0 %v1360
    %v1362 = vpop.xlane.xlu0 %1361
    %v1363 = vmul.f32 %v1359, %v252
    %v1364 = vmul.f32 %v1362, %v252
    %v1365 = vsub.f32 %v1351, %v1363
    %v1366 = vsub.f32 %v1352, %v1364
    %v1367 = vmul.f32 %v1365, %v1365
    %v1368 = vmul.f32 %v1366, %v1366
    %v1369 = vsel %vm245, %v1367, 0.0
    %1370 = vadd.xlane.f32.xlu0 %v1369
    %v1371 = vpop.xlane.xlu0 %1370
    %v1372 = vsel %vm245, %v1368, 0.0
    %1373 = vadd.xlane.f32.xlu0 %v1372
    %v1374 = vpop.xlane.xlu0 %1373
    %v1375 = vmul.f32 %v1371, %v252
    %v1376 = vmul.f32 %v1374, %v252
    %v1377 = vadd.f32 %v1375, 1e-12
    %v1378 = vadd.f32 %v1376, 1e-12
    %v1379 = vrsqrt.pop %v1377
    %v1380 = vrsqrt.pop %v1378
    %v1381 = vmul.f32 %v1365, %v1379
    %v1382 = vmul.f32 %v1366, %v1380
    %v1384 = vlaneseq
    %v1385 = vshrl.u32 %v1384, 7
    %v1386 = vsub.s32 0, %v1385
    %v1387 = vrot.slane %v1354, %v1386
    %v1389 = vmul.f32 %v1381, %v1387
    %v1390 = vmul.f32 %v1382, %v1387
    %v1392 = vlaneseq
    %v1393 = vshrl.u32 %v1392, 7
    %v1394 = vsub.s32 0, %v1393
    %v1395 = vrot.slane %v1356, %v1394
    %v1397 = vadd.f32 %v1389, %v1395
    %v1398 = vadd.f32 %v1390, %v1395
    %s1399 = scalar_lea.vmem %s10, 16
    %v1400 = vld [vmem:[%s1399] sm:$0xf]
    %v1401 = vld [vmem:[%s1399 + $0x4] sm:$0xf]
    %v1402 = vld [vmem:[%s1399 + $0x8] sm:$0xf]
    %v1403 = vld [vmem:[%s1399 + $0xc] sm:$0xf]
    %v1404 = vpack.c.bf16 %v1398, %v1397
    %s1405 = scalar_lea.vmem [#allocation16], 1
    %v1406 = vld [vmem:[%s1405] sm:$0x1]
    %v1408 = vlaneseq
    %v1409 = vshrl.u32 %v1408, 7
    %v1410 = vsub.s32 0, %v1409
    %v1411 = vrot.slane %v1406, %v1410
    %v1417 = vunpack.c.l.b16 %v1400
    %v1418 = vunpack.c.l.b16 %v1401
    %v1419 = vunpack.c.l.b16 %v1402
    %v1420 = vunpack.c.l.b16 %v1403
    %v1421 = vpack.c.b16 %v1418, %v1417
    %v1422 = vpack.c.b16 %v1420, %v1419
    %v1426 = vsel %vm245, %v1404, 0
    %1428 = vmatprep.subr.bf16.mxu0 0
    %1429 = vmatpush1.bf16.msra.mxu0 %v1421
    %1430 = vmatprep.subr.bf16.mxu0 0
    %1431 = vmatpush1.bf16.msra.mxu0 %v1422
    %1432 = vmatprep.subr.bf16.mxu0 0
    %1433 = vmatpush1.bf16.msra.mxu0 0
    %1434 = vmatprep.subr.bf16.mxu0 0
    %1435 = vmatpush1.bf16.msra.mxu0 0
    %1436 = vmatprep.subr.bf16.mxu0 0
    %1437 = vmatpush1.bf16.msra.mxu0 0
    %1438 = vmatprep.subr.bf16.mxu0 0
    %1439 = vmatpush1.bf16.msra.mxu0 0
    %1440 = vmatprep.subr.bf16.mxu0 0
    %1441 = vmatpush1.bf16.msra.mxu0 0
    %1442 = vmatprep.subr.bf16.mxu0 0
    %1443 = vmatpush1.bf16.msra.mxu0 0
    %1444 = vmatprep.subr.bf16.mxu0 0
    %1445 = vmatpush1.bf16.msra.mxu0 0
    %1446 = vmatprep.subr.bf16.mxu0 0
    %1447 = vmatpush1.bf16.msra.mxu0 0
    %1448 = vmatprep.subr.bf16.mxu0 0
    %1449 = vmatpush1.bf16.msra.mxu0 0
    %1450 = vmatprep.subr.bf16.mxu0 0
    %1451 = vmatpush1.bf16.msra.mxu0 0
    %1452 = vmatprep.subr.bf16.mxu0 0
    %1453 = vmatpush1.bf16.msra.mxu0 0
    %1454 = vmatprep.subr.bf16.mxu0 0
    %1455 = vmatpush1.bf16.msra.mxu0 0
    %1456 = vmatprep.subr.bf16.mxu0 0
    %1457 = vmatpush1.bf16.msra.mxu0 0
    %1458 = vmatprep.subr.bf16.mxu0 0
    %1459 = vmatpush1.bf16.msra.mxu0 0
    %1460 = vmatprep.mubr.bf16.mxu0 0
    %1461 = vmatmul.mubr.bf16.gmra.mrb[0].mxu0 %v1426
    %v1462 = vpop.f32.mrb[0].mxu0
    %v1463 = vadd.f32 %v1411, %v1462
    %v1464 = vpop.f32.mrb[0].mxu0
    %v1465 = vpop.f32.mrb[0].mxu0
    %v1466 = vadd.f32 %v1411, %v1465
    %v1467 = vpop.f32.mrb[0].mxu0
    %1468 = vdwg.mxu0
    %v1469 = vmul.f32 %v1463, 0.5
    %v1470 = vmul.f32 %v1466, 0.5
    %v1471 = vmul.f32 %v1463, 0.044715
    %v1472 = vmul.f32 %v1466, 0.044715
    %v1473 = vmul.f32 %v1471, %v1463
    %v1474 = vmul.f32 %v1472, %v1466
    %v1475 = vmul.f32 %v1473, %v1463
    %v1476 = vmul.f32 %v1474, %v1466
    %v1477 = vadd.f32 %v1463, %v1475
    %v1478 = vadd.f32 %v1466, %v1476
    %v1479 = vmul.f32 %v1477, 0.7978846
    %v1480 = vmul.f32 %v1478, 0.7978846
    %v1481 = vtanh.pop %v1479
    %v1482 = vtanh.pop %v1480
    %v1483 = vadd.f32 %v1481, 1.0
    %v1484 = vadd.f32 %v1482, 1.0
    %v1485 = vmul.f32 %v1469, %v1483
    %v1486 = vmul.f32 %v1470, %v1484
    %s1487 = scalar_lea.vmem %s12, 32
    %v1488 = vld [vmem:[%s1487] sm:$0xf]
    %v1489 = vld [vmem:[%s1487 + $0x4] sm:$0xf]
    %v1490 = vld [vmem:[%s1487 + $0x8] sm:$0xf]
    %v1491 = vld [vmem:[%s1487 + $0xc] sm:$0xf]
    %v1492 = vld [vmem:[%s1487 + $0x10] sm:$0xf]
    %v1493 = vld [vmem:[%s1487 + $0x14] sm:$0xf]
    %v1494 = vld [vmem:[%s1487 + $0x18] sm:$0xf]
    %v1495 = vld [vmem:[%s1487 + $0x1c] sm:$0xf]
    %v1496 = vpack.c.bf16 %v1486, %v1485
    %s1497 = scalar_lea.vmem [#allocation17], 1
    %v1498 = vld [vmem:[%s1497] sm:$0x1]
    %v1500 = vlaneseq
    %v1501 = vshrl.u32 %v1500, 7
    %v1502 = vsub.s32 0, %v1501
    %v1503 = vrot.slane %v1498, %v1502
    %v1513 = vunpack.c.l.b16 %v1488
    %v1514 = vunpack.c.l.b16 %v1489
    %v1515 = vunpack.c.l.b16 %v1490
    %v1516 = vunpack.c.l.b16 %v1491
    %v1517 = vunpack.c.l.b16 %v1492
    %v1518 = vunpack.c.l.b16 %v1493
    %v1519 = vunpack.c.l.b16 %v1494
    %v1520 = vunpack.c.l.b16 %v1495
    %v1521 = vpack.c.b16 %v1514, %v1513
    %v1522 = vpack.c.b16 %v1516, %v1515
    %v1523 = vpack.c.b16 %v1518, %v1517
    %v1524 = vpack.c.b16 %v1520, %v1519
    %v1530 = vsel %vm860, %v1496, 0
    %1532 = vmatprep.subr.bf16.mxu0 0
    %1533 = vmatpush1.bf16.msra.mxu0 %v1521
    %1534 = vmatprep.subr.bf16.mxu0 0
    %1535 = vmatpush1.bf16.msra.mxu0 %v1522
    %1536 = vmatprep.subr.bf16.mxu0 0
    %1537 = vmatpush1.bf16.msra.mxu0 %v1523
    %1538 = vmatprep.subr.bf16.mxu0 0
    %1539 = vmatpush1.bf16.msra.mxu0 %v1524
    %1540 = vmatprep.subr.bf16.mxu0 0
    %1541 = vmatpush1.bf16.msra.mxu0 0
    %1542 = vmatprep.subr.bf16.mxu0 0
    %1543 = vmatpush1.bf16.msra.mxu0 0
    %1544 = vmatprep.subr.bf16.mxu0 0
    %1545 = vmatpush1.bf16.msra.mxu0 0
    %1546 = vmatprep.subr.bf16.mxu0 0
    %1547 = vmatpush1.bf16.msra.mxu0 0
    %1548 = vmatprep.subr.bf16.mxu0 0
    %1549 = vmatpush1.bf16.msra.mxu0 0
    %1550 = vmatprep.subr.bf16.mxu0 0
    %1551 = vmatpush1.bf16.msra.mxu0 0
    %1552 = vmatprep.subr.bf16.mxu0 0
    %1553 = vmatpush1.bf16.msra.mxu0 0
    %1554 = vmatprep.subr.bf16.mxu0 0
    %1555 = vmatpush1.bf16.msra.mxu0 0
    %1556 = vmatprep.subr.bf16.mxu0 0
    %1557 = vmatpush1.bf16.msra.mxu0 0
    %1558 = vmatprep.subr.bf16.mxu0 0
    %1559 = vmatpush1.bf16.msra.mxu0 0
    %1560 = vmatprep.subr.bf16.mxu0 0
    %1561 = vmatpush1.bf16.msra.mxu0 0
    %1562 = vmatprep.subr.bf16.mxu0 0
    %1563 = vmatpush1.bf16.msra.mxu0 0
    %1564 = vmatprep.mubr.bf16.mxu0 0
    %1565 = vmatmul.mubr.bf16.gmra.mrb[0].mxu0 %v1530
    %v1566 = vpop.f32.mrb[0].mxu0
    %v1567 = vadd.f32 %v1503, %v1566
    %v1568 = vpop.f32.mrb[0].mxu0
    %v1569 = vpop.f32.mrb[0].mxu0
    %v1570 = vadd.f32 %v1503, %v1569
    %v1571 = vpop.f32.mrb[0].mxu0
    %1572 = vdwg.mxu0
    %v1573 = vadd.f32 %v1567, %v1397
    %v1574 = vadd.f32 %v1570, %v1398
    %s1575 = scalar_lea.vmem [#allocation19], 1
    %v1576 = vld [vmem:[%s1575] sm:$0x1]
    %s1577 = scalar_lea.vmem [#allocation20], 1
    %v1578 = vld [vmem:[%s1577] sm:$0x1]
    %v1579 = vsel %vm245, %v1573, 0.0
    %1580 = vadd.xlane.f32.xlu0 %v1579
    %v1581 = vpop.xlane.xlu0 %1580
    %v1582 = vsel %vm245, %v1574, 0.0
    %1583 = vadd.xlane.f32.xlu0 %v1582
    %v1584 = vpop.xlane.xlu0 %1583
    %v1585 = vmul.f32 %v1581, %v252
    %v1586 = vmul.f32 %v1584, %v252
    %v1587 = vsub.f32 %v1573, %v1585
    %v1588 = vsub.f32 %v1574, %v1586
    %v1589 = vmul.f32 %v1587, %v1587
    %v1590 = vmul.f32 %v1588, %v1588
    %v1591 = vsel %vm245, %v1589, 0.0
    %1592 = vadd.xlane.f32.xlu0 %v1591
    %v1593 = vpop.xlane.xlu0 %1592
    %v1594 = vsel %vm245, %v1590, 0.0
    %1595 = vadd.xlane.f32.xlu0 %v1594
    %v1596 = vpop.xlane.xlu0 %1595
    %v1597 = vmul.f32 %v1593, %v252
    %v1598 = vmul.f32 %v1596, %v252
    %v1599 = vadd.f32 %v1597, 1e-12
    %v1600 = vadd.f32 %v1598, 1e-12
    %v1601 = vrsqrt.pop %v1599
    %v1602 = vrsqrt.pop %v1600
    %v1603 = vmul.f32 %v1587, %v1601
    %v1604 = vmul.f32 %v1588, %v1602
    %v1606 = vlaneseq
    %v1607 = vshrl.u32 %v1606, 7
    %v1608 = vsub.s32 0, %v1607
    %v1609 = vrot.slane %v1576, %v1608
    %v1611 = vmul.f32 %v1603, %v1609
    %v1612 = vmul.f32 %v1604, %v1609
    %v1614 = vlaneseq
    %v1615 = vshrl.u32 %v1614, 7
    %v1616 = vsub.s32 0, %v1615
    %v1617 = vrot.slane %v1578, %v1616
    %v1619 = vadd.f32 %v1611, %v1617
    %v1620 = vadd.f32 %v1612, %v1617
    %1621 = vst.msk [vmem:[#allocation26] sm:$0xff] %vm245, %v1619
    %1622 = vst.msk [vmem:[#allocation26 + $0x8] sm:$0xff] %vm245, %v1620
    %1625 = vrot.lane.b32.xlu0 %v559, 16
    %v1626 = vpop.permute.xlu0 %1625
    %1627 = vrot.lane.b32.xlu0 %v561, 16
    %v1628 = vpop.permute.xlu0 %1627
    %1633 = vrot.lane.b32.xlu0 %v1095, 32
    %v1634 = vpop.permute.xlu0 %1633
    %1635 = vrot.lane.b32.xlu0 %v1097, 32
    %v1636 = vpop.permute.xlu0 %1635
    %1641 = vrot.lane.b32.xlu0 %v1220, 48
    %v1642 = vpop.permute.xlu0 %1641
    %1643 = vrot.lane.b32.xlu0 %v1222, 48
    %v1644 = vpop.permute.xlu0 %1643
    %v1647 = vsel %vm363, %v434, %v1626
    %v1648 = vsel %vm363, %v436, %v1628
    %v1649 = vsel %vm245, %v1647, %v1634
    %v1650 = vsel %vm245, %v1648, %v1636
    %vm1651 = vcmask 392192
    %v1652 = vsel %vm1651, %v1649, %v1642
    %v1653 = vsel %vm1651, %v1650, %v1644
    %1654 = vst.msk [vmem:[#allocation24] sm:$0xff] %vm860, %v1652
    %1655 = vst.msk [vmem:[#allocation24 + $0x8] sm:$0xff] %vm860, %v1653
    %v1657 = vrot.slane %v1620, 7
    %vm1659 = vcmask 1040384
    %v1660 = vsel %vm1659, %v1619, %v1657
    %v1661 = vld [vmem:[%s16] sm:$0xf]
    %v1662 = vld [vmem:[%s16 + $0x4] sm:$0xf]
    %v1663 = vld [vmem:[%s16 + $0x8] sm:$0xf]
    %v1664 = vld [vmem:[%s16 + $0xc] sm:$0xf]
    %v1665 = vpack.c.bf16 %v1660, %v1660
    %v1666 = vld [vmem:[#allocation22] sm:$0x1]
    %v1668 = vlaneseq
    %v1669 = vshrl.u32 %v1668, 7
    %v1670 = vsub.s32 0, %v1669
    %v1671 = vrot.slane %v1666, %v1670
    %v1677 = vunpack.c.l.b16 %v1661
    %v1678 = vunpack.c.l.b16 %v1662
    %v1679 = vunpack.c.l.b16 %v1663
    %v1680 = vunpack.c.l.b16 %v1664
    %v1681 = vpack.c.b16 %v1678, %v1677
    %v1682 = vpack.c.b16 %v1680, %v1679
    %v1686 = vsel %vm245, %v1665, 0
    %1688 = vmatprep.subr.bf16.mxu0 0
    %1689 = vmatpush1.bf16.msra.mxu0 %v1681
    %1690 = vmatprep.subr.bf16.mxu0 0
    %1691 = vmatpush1.bf16.msra.mxu0 %v1682
    %1692 = vmatprep.subr.bf16.mxu0 0
    %1693 = vmatpush1.bf16.msra.mxu0 0
    %1694 = vmatprep.subr.bf16.mxu0 0
    %1695 = vmatpush1.bf16.msra.mxu0 0
    %1696 = vmatprep.subr.bf16.mxu0 0
    %1697 = vmatpush1.bf16.msra.mxu0 0
    %1698 = vmatprep.subr.bf16.mxu0 0
    %1699 = vmatpush1.bf16.msra.mxu0 0
    %1700 = vmatprep.subr.bf16.mxu0 0
    %1701 = vmatpush1.bf16.msra.mxu0 0
    %1702 = vmatprep.subr.bf16.mxu0 0
    %1703 = vmatpush1.bf16.msra.mxu0 0
    %1704 = vmatprep.subr.bf16.mxu0 0
    %1705 = vmatpush1.bf16.msra.mxu0 0
    %1706 = vmatprep.subr.bf16.mxu0 0
    %1707 = vmatpush1.bf16.msra.mxu0 0
    %1708 = vmatprep.subr.bf16.mxu0 0
    %1709 = vmatpush1.bf16.msra.mxu0 0
    %1710 = vmatprep.subr.bf16.mxu0 0
    %1711 = vmatpush1.bf16.msra.mxu0 0
    %1712 = vmatprep.subr.bf16.mxu0 0
    %1713 = vmatpush1.bf16.msra.mxu0 0
    %1714 = vmatprep.subr.bf16.mxu0 0
    %1715 = vmatpush1.bf16.msra.mxu0 0
    %1716 = vmatprep.subr.bf16.mxu0 0
    %1717 = vmatpush1.bf16.msra.mxu0 0
    %1718 = vmatprep.subr.bf16.mxu0 0
    %1719 = vmatpush1.bf16.msra.mxu0 0
    %1720 = vmatprep.mubr.bf16.mxu0 0
    %1721 = vmatmul.mubr.bf16.gmra.mrb[0].mxu0 %v1686
    %v1722 = vpop.f32.mrb[0].mxu0
    %v1723 = vadd.f32 %v1671, %v1722
    %v1724 = vpop.f32.mrb[0].mxu0
    %v1725 = vpop.f32.mrb[0].mxu0
    %v1726 = vpop.f32.mrb[0].mxu0
    %1727 = vdwg.mxu0
    %v1728 = vtanh.pop %v1723
    %v1729 = vld [vmem:[%s18] sm:$0xf]
    %v1730 = vld [vmem:[%s18 + $0x4] sm:$0xf]
    %v1731 = vld [vmem:[%s18 + $0x8] sm:$0xf]
    %v1732 = vld [vmem:[%s18 + $0xc] sm:$0xf]
    %v1733 = vpack.c.bf16 %v1728, %v1728
    %v1734 = vld [vmem:[%s19] sm:$0x1]
    %v1736 = vlaneseq
    %v1737 = vshrl.u32 %v1736, 7
    %v1738 = vsub.s32 0, %v1737
    %v1739 = vrot.slane %v1734, %v1738
    %v1745 = vunpack.c.l.b16 %v1729
    %v1746 = vunpack.c.l.b16 %v1730
    %v1747 = vunpack.c.l.b16 %v1731
    %v1748 = vunpack.c.l.b16 %v1732
    %v1749 = vpack.c.b16 %v1746, %v1745
    %v1750 = vpack.c.b16 %v1748, %v1747
    %v1754 = vsel %vm245, %v1733, 0
    %1756 = vmatprep.subr.bf16.mxu0 0
    %1757 = vmatpush1.bf16.msra.mxu0 %v1749
    %1758 = vmatprep.subr.bf16.mxu0 0
    %1759 = vmatpush1.bf16.msra.mxu0 %v1750
    %1760 = vmatprep.subr.bf16.mxu0 0
    %1761 = vmatpush1.bf16.msra.mxu0 0
    %1762 = vmatprep.subr.bf16.mxu0 0
    %1763 = vmatpush1.bf16.msra.mxu0 0
    %1764 = vmatprep.subr.bf16.mxu0 0
    %1765 = vmatpush1.bf16.msra.mxu0 0
    %1766 = vmatprep.subr.bf16.mxu0 0
    %1767 = vmatpush1.bf16.msra.mxu0 0
    %1768 = vmatprep.subr.bf16.mxu0 0
    %1769 = vmatpush1.bf16.msra.mxu0 0
    %1770 = vmatprep.subr.bf16.mxu0 0
    %1771 = vmatpush1.bf16.msra.mxu0 0
    %1772 = vmatprep.subr.bf16.mxu0 0
    %1773 = vmatpush1.bf16.msra.mxu0 0
    %1774 = vmatprep.subr.bf16.mxu0 0
    %1775 = vmatpush1.bf16.msra.mxu0 0
    %1776 = vmatprep.subr.bf16.mxu0 0
    %1777 = vmatpush1.bf16.msra.mxu0 0
    %1778 = vmatprep.subr.bf16.mxu0 0
    %1779 = vmatpush1.bf16.msra.mxu0 0
    %1780 = vmatprep.subr.bf16.mxu0 0
    %1781 = vmatpush1.bf16.msra.mxu0 0
    %1782 = vmatprep.subr.bf16.mxu0 0
    %1783 = vmatpush1.bf16.msra.mxu0 0
    %1784 = vmatprep.subr.bf16.mxu0 0
    %1785 = vmatpush1.bf16.msra.mxu0 0
    %1786 = vmatprep.subr.bf16.mxu0 0
    %1787 = vmatpush1.bf16.msra.mxu0 0
    %1788 = vmatprep.mubr.bf16.mxu0 0
    %1789 = vmatmul.mubr.bf16.gmra.mrb[0].mxu0 %v1754
    %v1790 = vpop.f32.mrb[0].mxu0
    %v1791 = vadd.f32 %v1739, %v1790
    %v1792 = vpop.f32.mrb[0].mxu0
    %v1793 = vpop.f32.mrb[0].mxu0
    %v1794 = vpop.f32.mrb[0].mxu0
    %1795 = vdwg.mxu0
    %1796 = vst [vmem:[#allocation23] sm:$0x3] %v1791
    // Predicated region
    $region134: #{tpu_custom_call.1} parent=1 // pred_check
      _
    $region135: #{tpu_custom_call.1} parent=1 // pred_check_branch
      %1798 = sbr.rel (0) target = $region137
    $region136: #{tpu_custom_call.1} parent=1 // pred_region
      %s1800 = ssub.s32 32, 32
      %1801 = vsyncadd [#allocation4], %s1800
      %s1803 = sshll.u32 [#allocation23], 4
      %s1804 = int_to_ptr.vmem [resolvable:$true] %s1803
      %1806 = dma.vmem_to_hbm [thread:$0]  %s1804, 32, %s20, [#allocation4]
    $region137: #{tpu_custom_call.1} parent=1 // pred_fallthru
      _
    // Predicated region
    $region138: #{tpu_custom_call.1} parent=1 // pred_check
      _
    $region139: #{tpu_custom_call.1} parent=1 // pred_check_branch
      %1808 = sbr.rel (0) target = $region141
    $region140: #{tpu_custom_call.1} parent=1 // pred_region
      %s1810 = ssub.s32 256, 256
      %1811 = vsyncadd [#allocation25], %s1810
      %s1812 = sshll.u32 [#allocation24], 4
      %s1813 = int_to_ptr.vmem [resolvable:$true] %s1812
      %1818 = dma.vmem_to_hbm [thread:$0]  %s1813, 256, %s21, [#allocation25], 128, 128, 8
    $region141: #{tpu_custom_call.1} parent=1 // pred_fallthru
      _
    // Predicated region
    $region142: #{tpu_custom_call.1} parent=1 // pred_check
      _
    $region143: #{tpu_custom_call.1} parent=1 // pred_check_branch
      %1820 = sbr.rel (0) target = $region145
    $region144: #{tpu_custom_call.1} parent=1 // pred_region
      %s1822 = ssub.s32 256, 256
      %1823 = vsyncadd [#allocation25], %s1822
      %s1824 = sshll.u32 [#allocation26], 4
      %s1825 = int_to_ptr.vmem [resolvable:$true] %s1824
      %1830 = dma.vmem_to_hbm [thread:$0]  %s1825, 256, %s22, [#allocation25], 128, 128, 8
    $region145: #{tpu_custom_call.1} parent=1 // pred_fallthru
      _
    // Predicated region
    $region146: #{tpu_custom_call.1} parent=1 // pred_check
      _
    $region147: #{tpu_custom_call.1} parent=1 // pred_check_branch
      %1832 = sbr.rel (0) target = $region149
    $region148: #{tpu_custom_call.1} parent=1 // pred_region
      %1833 = dma.done [#allocation4], 32
    $region149: #{tpu_custom_call.1} parent=1 // pred_fallthru
      _
    // Predicated region
    $region150: #{tpu_custom_call.1} parent=1 // pred_check
      _
    $region151: #{tpu_custom_call.1} parent=1 // pred_check_branch
      %1835 = sbr.rel (0) target = $region153
    $region152: #{tpu_custom_call.1} parent=1 // pred_region
      %1836 = dma.done [#allocation25], 256
    $region153: #{tpu_custom_call.1} parent=1 // pred_fallthru
      _
    // Predicated region
    $region154: #{tpu_custom_call.1} parent=1 // pred_check
      _
    $region155: #{tpu_custom_call.1} parent=1 // pred_check_branch
      %1838 = sbr.rel (0) target = $region157
    $region156: #{tpu_custom_call.1} parent=1 // pred_region
      %1839 = dma.done [#allocation25], 256
    $region157: #{tpu_custom_call.1} parent=1 // pred_fallthru
      _
    %1840 = vsyncpa [#allocation3], 1
    %1841 = vsyncpa [#allocation6], 1
    %1842 = vsyncpa [#allocation9], 1
    %1843 = vsyncpa [#allocation12], 1
    %1844 = vsyncpa [#allocation15], 1
    %1845 = vsyncpa [#allocation18], 1
    %1846 = vsyncpa [#allocation21], 1
    %1847 = vsyncpa [#allocation4], 1
    %1848 = vsyncpa [#allocation25], 1

</llo_original>
